<compile_context>
chip_gen: v6e
topology: v6e:2x2x1
jax: 0.10.0
libtpu: 0.0.40
codegen_flags: <defaults>
</compile_context>

<pallas_src>
import jax
import jax.numpy as jnp
from jax.experimental import pallas as pl
from jax.experimental.pallas import tpu as pltpu

_BN_EPS = 1e-5
_VMEM = pl.BlockSpec(memory_space=pltpu.MemorySpace.VMEM)


# ---------------------------------------------------------------------------
# Fused forward kernel (single pallas_call, everything VMEM-resident)
# ---------------------------------------------------------------------------
def _make_fused_kernel(num_layers):
    n_in = 4 + 3 * num_layers + 10   # a, x, p, attrs17, per-layer(wl,wr,b), heads

    def kernel(*refs):
        in_refs = refs[:n_in]
        node_out_ref, reg_out_ref = refs[n_in], refs[n_in + 1]

        a_ref, x_ref, p_ref, attrs_ref = in_refs[:4]
        layer_refs = in_refs[4:4 + 3 * num_layers]
        (lin1_w, lin1_b, lin2_w, lin2_b, lin3_w, lin3_b,
         reg1_w, reg1_b, reg2_w, reg2_b) = in_refs[4 + 3 * num_layers:]

        a = a_ref[...]                       # [N, N] bf16, loaded once, reused
        x0 = x_ref[...]                      # [N, F] f32
        delay = x0[:, 0:1]                   # delay_param = x[:, 0]

        # conv -> (BN folded) -> relu -> (dropout: identity in eval)  x L
        h = x0
        feats = []
        for i in range(num_layers):
            wl = layer_refs[3 * i][...]      # BN-folded lin_l weight [in, C]
            wr = layer_refs[3 * i + 1][...]  # BN-folded lin_r weight [in, C]
            b = layer_refs[3 * i + 2][...]   # BN-folded bias         [1, C]
            agg = jnp.dot(a, h.astype(jnp.bfloat16),
                          preferred_element_type=jnp.float32)          # A @ h
            h = jnp.maximum(
                jnp.dot(agg, wl, preferred_element_type=jnp.float32)
                + jnp.dot(h, wr, preferred_element_type=jnp.float32)
                + b, 0.0)
            feats.append(h)

        # JumpingKnowledge(mode='cat') — stays in VMEM, no HBM round trip.
        x_cat = jnp.concatenate(feats, axis=1)                # [N, C*L]

        # Node MLP head.
        t = jnp.maximum(
            jnp.dot(x_cat, lin1_w[...],
                    preferred_element_type=jnp.float32) + lin1_b[...], 0.0)
        t = jnp.maximum(
            jnp.dot(t, lin2_w[...],
                    preferred_element_type=jnp.float32) + lin2_b[...], 0.0)
        node_out = jnp.dot(t, lin3_w[...],
                           preferred_element_type=jnp.float32) + lin3_b[...]
        node_out_ref[...] = node_out                          # [N, 1]

        # Lane-dense pooling: one matmul gives both global_mean_pool outputs.
        pool_src = jnp.concatenate([x_cat, node_out * delay], axis=1)   # [N, C*L+1]
        pooled = jnp.dot(p_ref[...], pool_src,
                         preferred_element_type=jnp.float32)            # [B, C*L+1]
        c = x_cat.shape[1]
        x_pool = pooled[:, :c]
        x_class = pooled[:, c:c + 1]

        # Regression head.
        reg_in = jnp.concatenate([attrs_ref[...], x_class, x_pool], axis=1)
        r = jnp.maximum(
            jnp.dot(reg_in, reg1_w[...],
                    preferred_element_type=jnp.float32) + reg1_b[...], 0.0)
        reg_out_ref[...] = jnp.dot(r, reg2_w[...],
                                   preferred_element_type=jnp.float32) + reg2_b[...]

    return kernel


# ---------------------------------------------------------------------------
# Parameter init (deterministic, PyTorch-Linear-like uniform init)
# ---------------------------------------------------------------------------
def _dense_init(key, fan_in, fan_out):
    k_w, k_b = jax.random.split(key)
    bound = 1.0 / jnp.sqrt(jnp.float32(fan_in))
    w = jax.random.uniform(k_w, (fan_in, fan_out), jnp.float32, -bound, bound)
    b = jax.random.uniform(k_b, (1, fan_out), jnp.float32, -bound, bound)
    return w, b


def init_params(key, num_node_features, conv_neurons, num_layers):
    params = {"layers": []}
    keys = jax.random.split(key, num_layers * 2 + 5)
    ki = 0
    for i in range(num_layers):
        in_ch = num_node_features if i == 0 else conv_neurons
        wl, bl = _dense_init(keys[ki], in_ch, conv_neurons); ki += 1
        wr, _ = _dense_init(keys[ki], in_ch, conv_neurons); ki += 1   # root lin, no bias
        params["layers"].append(dict(
            wl=wl, wr=wr, bl=bl,
            gamma=jnp.ones((1, conv_neurons), jnp.float32),
            beta=jnp.zeros((1, conv_neurons), jnp.float32),
            mean=jnp.zeros((1, conv_neurons), jnp.float32),
            var=jnp.ones((1, conv_neurons), jnp.float32),
        ))
    concat = conv_neurons * num_layers
    params["lin1"] = _dense_init(keys[ki], concat, conv_neurons * 2); ki += 1
    params["lin2"] = _dense_init(keys[ki], conv_neurons * 2, conv_neurons // 2); ki += 1
    params["lin3"] = _dense_init(keys[ki], conv_neurons // 2, 1); ki += 1
    params["reg_lin1"] = _dense_init(keys[ki], 17 + concat + 1, 32); ki += 1
    params["reg_lin2"] = _dense_init(keys[ki], 32, 1); ki += 1
    return params


# ---------------------------------------------------------------------------
# Forward pass: graph preprocessing + BN folding in JAX, compute in one kernel
# ---------------------------------------------------------------------------
def sage_jk_forward(params, x, edge_index, batch, other_attrs, num_graphs):
    n, feat = x.shape
    num_layers = len(params["layers"])
    conv_neurons = params["layers"][0]["wl"].shape[1]
    concat = conv_neurons * num_layers

    # Mean-aggregation adjacency: A[i, j] = 1/deg_in(i) for edge j -> i (bf16).
    # TODO(synk): for realistic graph sizes replace the dense O(N^2) adjacency
    # with a sparse-gather aggregation kernel (PrefetchScalarGridSpec + row gather).
    src, dst = edge_index[0], edge_index[1]
    a = jnp.zeros((n, n), jnp.float32).at[dst, src].add(1.0)
    deg = a.sum(axis=1, keepdims=True)
    a = (a / jnp.maximum(deg, 1.0)).astype(jnp.bfloat16)

    # global_mean_pool matrix: P[b, i] = 1/|graph b| if batch[i] == b.
    onehot = (batch[None, :] == jnp.arange(num_graphs)[:, None]).astype(jnp.float32)
    counts = onehot.sum(axis=1, keepdims=True)
    p = onehot / jnp.maximum(counts, 1.0)

    oa = other_attrs.reshape(-1, 18)
    attrs17 = oa[:, :17]
    last_attr = oa[:, -1:]

    # Fold eval-mode BatchNorm into the conv weights (host-side, tiny).
    layer_args = []
    for lp in params["layers"]:
        scale = lp["gamma"] * jax.lax.rsqrt(lp["var"] + _BN_EPS)
        layer_args += [lp["wl"] * scale,
                       lp["wr"] * scale,
                       lp["bl"] * scale + lp["beta"] - lp["mean"] * scale]

    inputs = [a, x, p, attrs17] + layer_args + [
        params["lin1"][0], params["lin1"][1],
        params["lin2"][0], params["lin2"][1],
        params["lin3"][0], params["lin3"][1],
        params["reg_lin1"][0], params["reg_lin1"][1],
        params["reg_lin2"][0], params["reg_lin2"][1],
    ]

    # Cost estimate (advisory) and explicit VMEM budget.
    flops = 0
    d_in = feat
    for _ in range(num_layers):
        flops += 2 * n * n * d_in                      # A @ h
        flops += 2 * 2 * n * d_in * conv_neurons       # agg @ Wl + h @ Wr
        d_in = conv_neurons
    flops += 2 * n * concat * (2 * conv_neurons)       # lin1
    flops += 2 * n * (2 * conv_neurons) * (conv_neurons // 2)   # lin2
    flops += 2 * n * (conv_neurons // 2)               # lin3
    flops += 2 * num_graphs * n * (concat + 1)         # pooling matmul
    flops += 2 * num_graphs * (17 + concat + 1) * 32   # reg_lin1
    flops += 2 * num_graphs * 32                       # reg_lin2
    bytes_accessed = int(sum(int(v.size) * v.dtype.itemsize for v in inputs)
                         + n * 4 + num_graphs * 4)

    kernel = _make_fused_kernel(num_layers)
    node_output, reg_output = pl.pallas_call(
        kernel,
        out_shape=(jax.ShapeDtypeStruct((n, 1), jnp.float32),
                   jax.ShapeDtypeStruct((num_graphs, 1), jnp.float32)),
        in_specs=[_VMEM] * len(inputs),
        out_specs=(_VMEM, _VMEM),
        compiler_params=pltpu.CompilerParams(
            vmem_limit_bytes=16 * 1024 * 1024),
        cost_estimate=pl.CostEstimate(flops=flops, transcendentals=0,
                                      bytes_accessed=bytes_accessed),
    )(*inputs)

    return node_output, reg_output, last_attr


# ---------------------------------------------------------------------------
# Main
# ---------------------------------------------------------------------------
if __name__ == "__main__":
    key = jax.random.PRNGKey(0)
    k_param, k_x, k_edge, k_attr = jax.random.split(key, 4)

    NUM_NODE_FEATURES = 8
    CONV_NEURONS = 32
    NUM_LAYERS = 3
    N_NODES = 16
    N_EDGES = 48
    N_GRAPHS = 2

    params = init_params(k_param, NUM_NODE_FEATURES, CONV_NEURONS, NUM_LAYERS)

    x = jax.random.normal(k_x, (N_NODES, NUM_NODE_FEATURES), jnp.float32)
    edge_index = jax.random.randint(k_edge, (2, N_EDGES), 0, N_NODES, jnp.int32)
    batch = jnp.concatenate([jnp.zeros(N_NODES // 2, jnp.int32),
                             jnp.ones(N_NODES - N_NODES // 2, jnp.int32)])
    other_attrs = jax.random.normal(k_attr, (N_GRAPHS * 18,), jnp.float32)

    node_output, reg_output, last_attr = sage_jk_forward(
        params, x, edge_index, batch, other_attrs, N_GRAPHS)

    jax.block_until_ready((node_output, reg_output, last_attr))
    assert node_output.shape == (N_NODES, 1)
    assert reg_output.shape == (N_GRAPHS, 1)
    assert last_attr.shape == (N_GRAPHS, 1)
    print("KERNEL_OK")
</pallas_src>

<mosaic_0001>
module attributes {stable_mosaic.version = 11 : i64} {
  func.func @kernel(%arg0: memref<16x16xbf16, #tpu.memory_space<vmem>>, %arg1: memref<16x8xf32, #tpu.memory_space<vmem>>, %arg2: memref<2x16xf32, #tpu.memory_space<vmem>>, %arg3: memref<2x17xf32, #tpu.memory_space<vmem>>, %arg4: memref<8x32xf32, #tpu.memory_space<vmem>>, %arg5: memref<8x32xf32, #tpu.memory_space<vmem>>, %arg6: memref<1x32xf32, #tpu.memory_space<vmem>>, %arg7: memref<32x32xf32, #tpu.memory_space<vmem>>, %arg8: memref<32x32xf32, #tpu.memory_space<vmem>>, %arg9: memref<1x32xf32, #tpu.memory_space<vmem>>, %arg10: memref<32x32xf32, #tpu.memory_space<vmem>>, %arg11: memref<32x32xf32, #tpu.memory_space<vmem>>, %arg12: memref<1x32xf32, #tpu.memory_space<vmem>>, %arg13: memref<96x64xf32, #tpu.memory_space<vmem>>, %arg14: memref<1x64xf32, #tpu.memory_space<vmem>>, %arg15: memref<64x16xf32, #tpu.memory_space<vmem>>, %arg16: memref<1x16xf32, #tpu.memory_space<vmem>>, %arg17: memref<16x1xf32, #tpu.memory_space<vmem>>, %arg18: memref<1x1xf32, #tpu.memory_space<vmem>>, %arg19: memref<114x32xf32, #tpu.memory_space<vmem>>, %arg20: memref<1x32xf32, #tpu.memory_space<vmem>>, %arg21: memref<32x1xf32, #tpu.memory_space<vmem>>, %arg22: memref<1x1xf32, #tpu.memory_space<vmem>>, %arg23: memref<16x1xf32, #tpu.memory_space<vmem>>, %arg24: memref<2x1xf32, #tpu.memory_space<vmem>>) attributes {dimension_semantics = [], scalar_prefetch = 0 : i64, scratch_operands = 0 : i64, tpu.core_type = #tpu.core_type<tc>} {
    %c0 = arith.constant 0 : index
    %c0_0 = arith.constant 0 : index
    %0 = vector.load %arg0[%c0, %c0_0] : memref<16x16xbf16, #tpu.memory_space<vmem>>, vector<16x16xbf16>
    %c0_1 = arith.constant 0 : index
    %c0_2 = arith.constant 0 : index
    %1 = vector.load %arg1[%c0_1, %c0_2] : memref<16x8xf32, #tpu.memory_space<vmem>>, vector<16x8xf32>
    %2 = vector.extract_strided_slice %1 {offsets = [0, 0], sizes = [16, 1], strides = [1, 1]} : vector<16x8xf32> to vector<16x1xf32>
    %c0_3 = arith.constant 0 : index
    %c0_4 = arith.constant 0 : index
    %3 = vector.load %arg4[%c0_3, %c0_4] : memref<8x32xf32, #tpu.memory_space<vmem>>, vector<8x32xf32>
    %c0_5 = arith.constant 0 : index
    %c0_6 = arith.constant 0 : index
    %4 = vector.load %arg5[%c0_5, %c0_6] : memref<8x32xf32, #tpu.memory_space<vmem>>, vector<8x32xf32>
    %c0_7 = arith.constant 0 : index
    %c0_8 = arith.constant 0 : index
    %5 = vector.load %arg6[%c0_7, %c0_8] : memref<1x32xf32, #tpu.memory_space<vmem>>, vector<1x32xf32>
    %6 = arith.truncf %1 : vector<16x8xf32> to vector<16x8xbf16>
    %cst = arith.constant dense<0.000000e+00> : vector<16x8xf32>
    %7 = tpu.matmul %0, %6, %cst {dimension_numbers = #tpu.dot_dimension_numbers<[1], [0], [0], [1], [0, 0, 1, 1], [], []>} : vector<16x16xbf16>, vector<16x8xbf16>, vector<16x8xf32> -> vector<16x8xf32>
    %cst_9 = arith.constant dense<0.000000e+00> : vector<16x32xf32>
    %8 = tpu.matmul %7, %3, %cst_9 {dimension_numbers = #tpu.dot_dimension_numbers<[1], [0], [0], [1], [0, 0, 1, 1], [], []>} : vector<16x8xf32>, vector<8x32xf32>, vector<16x32xf32> -> vector<16x32xf32>
    %cst_10 = arith.constant dense<0.000000e+00> : vector<16x32xf32>
    %9 = tpu.matmul %1, %4, %cst_10 {dimension_numbers = #tpu.dot_dimension_numbers<[1], [0], [0], [1], [0, 0, 1, 1], [], []>} : vector<16x8xf32>, vector<8x32xf32>, vector<16x32xf32> -> vector<16x32xf32>
    %10 = arith.addf %8, %9 : vector<16x32xf32>
    %11 = vector.broadcast %5 : vector<1x32xf32> to vector<16x32xf32>
    %12 = arith.addf %10, %11 : vector<16x32xf32>
    %cst_11 = arith.constant 0.000000e+00 : f32
    %13 = vector.broadcast %cst_11 : f32 to vector<16x32xf32>
    %14 = arith.maximumf %12, %13 : vector<16x32xf32>
    %c0_12 = arith.constant 0 : index
    %c0_13 = arith.constant 0 : index
    %15 = vector.load %arg7[%c0_12, %c0_13] : memref<32x32xf32, #tpu.memory_space<vmem>>, vector<32x32xf32>
    %c0_14 = arith.constant 0 : index
    %c0_15 = arith.constant 0 : index
    %16 = vector.load %arg8[%c0_14, %c0_15] : memref<32x32xf32, #tpu.memory_space<vmem>>, vector<32x32xf32>
    %c0_16 = arith.constant 0 : index
    %c0_17 = arith.constant 0 : index
    %17 = vector.load %arg9[%c0_16, %c0_17] : memref<1x32xf32, #tpu.memory_space<vmem>>, vector<1x32xf32>
    %18 = arith.truncf %14 : vector<16x32xf32> to vector<16x32xbf16>
    %cst_18 = arith.constant dense<0.000000e+00> : vector<16x32xf32>
    %19 = tpu.matmul %0, %18, %cst_18 {dimension_numbers = #tpu.dot_dimension_numbers<[1], [0], [0], [1], [0, 0, 1, 1], [], []>} : vector<16x16xbf16>, vector<16x32xbf16>, vector<16x32xf32> -> vector<16x32xf32>
    %cst_19 = arith.constant dense<0.000000e+00> : vector<16x32xf32>
    %20 = tpu.matmul %19, %15, %cst_19 {dimension_numbers = #tpu.dot_dimension_numbers<[1], [0], [0], [1], [0, 0, 1, 1], [], []>} : vector<16x32xf32>, vector<32x32xf32>, vector<16x32xf32> -> vector<16x32xf32>
    %cst_20 = arith.constant dense<0.000000e+00> : vector<16x32xf32>
    %21 = tpu.matmul %14, %16, %cst_20 {dimension_numbers = #tpu.dot_dimension_numbers<[1], [0], [0], [1], [0, 0, 1, 1], [], []>} : vector<16x32xf32>, vector<32x32xf32>, vector<16x32xf32> -> vector<16x32xf32>
    %22 = arith.addf %20, %21 : vector<16x32xf32>
    %23 = vector.broadcast %17 : vector<1x32xf32> to vector<16x32xf32>
    %24 = arith.addf %22, %23 : vector<16x32xf32>
    %cst_21 = arith.constant 0.000000e+00 : f32
    %25 = vector.broadcast %cst_21 : f32 to vector<16x32xf32>
    %26 = arith.maximumf %24, %25 : vector<16x32xf32>
    %c0_22 = arith.constant 0 : index
    %c0_23 = arith.constant 0 : index
    %27 = vector.load %arg10[%c0_22, %c0_23] : memref<32x32xf32, #tpu.memory_space<vmem>>, vector<32x32xf32>
    %c0_24 = arith.constant 0 : index
    %c0_25 = arith.constant 0 : index
    %28 = vector.load %arg11[%c0_24, %c0_25] : memref<32x32xf32, #tpu.memory_space<vmem>>, vector<32x32xf32>
    %c0_26 = arith.constant 0 : index
    %c0_27 = arith.constant 0 : index
    %29 = vector.load %arg12[%c0_26, %c0_27] : memref<1x32xf32, #tpu.memory_space<vmem>>, vector<1x32xf32>
    %30 = arith.truncf %26 : vector<16x32xf32> to vector<16x32xbf16>
    %cst_28 = arith.constant dense<0.000000e+00> : vector<16x32xf32>
    %31 = tpu.matmul %0, %30, %cst_28 {dimension_numbers = #tpu.dot_dimension_numbers<[1], [0], [0], [1], [0, 0, 1, 1], [], []>} : vector<16x16xbf16>, vector<16x32xbf16>, vector<16x32xf32> -> vector<16x32xf32>
    %cst_29 = arith.constant dense<0.000000e+00> : vector<16x32xf32>
    %32 = tpu.matmul %31, %27, %cst_29 {dimension_numbers = #tpu.dot_dimension_numbers<[1], [0], [0], [1], [0, 0, 1, 1], [], []>} : vector<16x32xf32>, vector<32x32xf32>, vector<16x32xf32> -> vector<16x32xf32>
    %cst_30 = arith.constant dense<0.000000e+00> : vector<16x32xf32>
    %33 = tpu.matmul %26, %28, %cst_30 {dimension_numbers = #tpu.dot_dimension_numbers<[1], [0], [0], [1], [0, 0, 1, 1], [], []>} : vector<16x32xf32>, vector<32x32xf32>, vector<16x32xf32> -> vector<16x32xf32>
    %34 = arith.addf %32, %33 : vector<16x32xf32>
    %35 = vector.broadcast %29 : vector<1x32xf32> to vector<16x32xf32>
    %36 = arith.addf %34, %35 : vector<16x32xf32>
    %cst_31 = arith.constant 0.000000e+00 : f32
    %37 = vector.broadcast %cst_31 : f32 to vector<16x32xf32>
    %38 = arith.maximumf %36, %37 : vector<16x32xf32>
    %39 = tpu.concatenate %14, %26, %38 in 1 : vector<16x32xf32>, vector<16x32xf32>, vector<16x32xf32> -> vector<16x96xf32>
    %c0_32 = arith.constant 0 : index
    %c0_33 = arith.constant 0 : index
    %40 = vector.load %arg13[%c0_32, %c0_33] : memref<96x64xf32, #tpu.memory_space<vmem>>, vector<96x64xf32>
    %cst_34 = arith.constant dense<0.000000e+00> : vector<16x64xf32>
    %41 = tpu.matmul %39, %40, %cst_34 {dimension_numbers = #tpu.dot_dimension_numbers<[1], [0], [0], [1], [0, 0, 1, 1], [], []>} : vector<16x96xf32>, vector<96x64xf32>, vector<16x64xf32> -> vector<16x64xf32>
    %c0_35 = arith.constant 0 : index
    %c0_36 = arith.constant 0 : index
    %42 = vector.load %arg14[%c0_35, %c0_36] : memref<1x64xf32, #tpu.memory_space<vmem>>, vector<1x64xf32>
    %43 = vector.broadcast %42 : vector<1x64xf32> to vector<16x64xf32>
    %44 = arith.addf %41, %43 : vector<16x64xf32>
    %cst_37 = arith.constant 0.000000e+00 : f32
    %45 = vector.broadcast %cst_37 : f32 to vector<16x64xf32>
    %46 = arith.maximumf %44, %45 : vector<16x64xf32>
    %c0_38 = arith.constant 0 : index
    %c0_39 = arith.constant 0 : index
    %47 = vector.load %arg15[%c0_38, %c0_39] : memref<64x16xf32, #tpu.memory_space<vmem>>, vector<64x16xf32>
    %cst_40 = arith.constant dense<0.000000e+00> : vector<16x16xf32>
    %48 = tpu.matmul %46, %47, %cst_40 {dimension_numbers = #tpu.dot_dimension_numbers<[1], [0], [0], [1], [0, 0, 1, 1], [], []>} : vector<16x64xf32>, vector<64x16xf32>, vector<16x16xf32> -> vector<16x16xf32>
    %c0_41 = arith.constant 0 : index
    %c0_42 = arith.constant 0 : index
    %49 = vector.load %arg16[%c0_41, %c0_42] : memref<1x16xf32, #tpu.memory_space<vmem>>, vector<1x16xf32>
    %50 = vector.broadcast %49 : vector<1x16xf32> to vector<16x16xf32>
    %51 = arith.addf %48, %50 : vector<16x16xf32>
    %cst_43 = arith.constant 0.000000e+00 : f32
    %52 = vector.broadcast %cst_43 : f32 to vector<16x16xf32>
    %53 = arith.maximumf %51, %52 : vector<16x16xf32>
    %c0_44 = arith.constant 0 : index
    %c0_45 = arith.constant 0 : index
    %54 = vector.load %arg17[%c0_44, %c0_45] : memref<16x1xf32, #tpu.memory_space<vmem>>, vector<16x1xf32>
    %cst_46 = arith.constant dense<0.000000e+00> : vector<16x1xf32>
    %55 = tpu.matmul %53, %54, %cst_46 {dimension_numbers = #tpu.dot_dimension_numbers<[1], [0], [0], [1], [0, 0, 1, 1], [], []>} : vector<16x16xf32>, vector<16x1xf32>, vector<16x1xf32> -> vector<16x1xf32>
    %c0_47 = arith.constant 0 : index
    %c0_48 = arith.constant 0 : index
    %56 = vector.load %arg18[%c0_47, %c0_48] : memref<1x1xf32, #tpu.memory_space<vmem>>, vector<1x1xf32>
    %57 = vector.broadcast %56 : vector<1x1xf32> to vector<16x1xf32>
    %58 = arith.addf %55, %57 : vector<16x1xf32>
    %c0_49 = arith.constant 0 : index
    %c0_50 = arith.constant 0 : index
    %59 = vector.load %arg23[%c0_49, %c0_50] : memref<16x1xf32, #tpu.memory_space<vmem>>, vector<16x1xf32>
    tpu.vector_store %arg23[%c0_49, %c0_50], %58 {strides = array<i32>} : memref<16x1xf32, #tpu.memory_space<vmem>>, vector<16x1xf32>,
    %60 = arith.mulf %58, %2 : vector<16x1xf32>
    %61 = tpu.concatenate %39, %60 in 1 : vector<16x96xf32>, vector<16x1xf32> -> vector<16x97xf32>
    %c0_51 = arith.constant 0 : index
    %c0_52 = arith.constant 0 : index
    %62 = vector.load %arg2[%c0_51, %c0_52] : memref<2x16xf32, #tpu.memory_space<vmem>>, vector<2x16xf32>
    %cst_53 = arith.constant dense<0.000000e+00> : vector<2x97xf32>
    %63 = tpu.matmul %62, %61, %cst_53 {dimension_numbers = #tpu.dot_dimension_numbers<[1], [0], [0], [1], [0, 0, 1, 1], [], []>} : vector<2x16xf32>, vector<16x97xf32>, vector<2x97xf32> -> vector<2x97xf32>
    %64 = vector.extract_strided_slice %63 {offsets = [0, 0], sizes = [2, 96], strides = [1, 1]} : vector<2x97xf32> to vector<2x96xf32>
    %65 = vector.extract_strided_slice %63 {offsets = [0, 96], sizes = [2, 1], strides = [1, 1]} : vector<2x97xf32> to vector<2x1xf32>
    %c0_54 = arith.constant 0 : index
    %c0_55 = arith.constant 0 : index
    %66 = vector.load %arg3[%c0_54, %c0_55] : memref<2x17xf32, #tpu.memory_space<vmem>>, vector<2x17xf32>
    %67 = tpu.concatenate %66, %65, %64 in 1 : vector<2x17xf32>, vector<2x1xf32>, vector<2x96xf32> -> vector<2x114xf32>
    %c0_56 = arith.constant 0 : index
    %c0_57 = arith.constant 0 : index
    %68 = vector.load %arg19[%c0_56, %c0_57] : memref<114x32xf32, #tpu.memory_space<vmem>>, vector<114x32xf32>
    %cst_58 = arith.constant dense<0.000000e+00> : vector<2x32xf32>
    %69 = tpu.matmul %67, %68, %cst_58 {dimension_numbers = #tpu.dot_dimension_numbers<[1], [0], [0], [1], [0, 0, 1, 1], [], []>} : vector<2x114xf32>, vector<114x32xf32>, vector<2x32xf32> -> vector<2x32xf32>
    %c0_59 = arith.constant 0 : index
    %c0_60 = arith.constant 0 : index
    %70 = vector.load %arg20[%c0_59, %c0_60] : memref<1x32xf32, #tpu.memory_space<vmem>>, vector<1x32xf32>
    %71 = vector.broadcast %70 : vector<1x32xf32> to vector<2x32xf32>
    %72 = arith.addf %69, %71 : vector<2x32xf32>
    %cst_61 = arith.constant 0.000000e+00 : f32
    %73 = vector.broadcast %cst_61 : f32 to vector<2x32xf32>
    %74 = arith.maximumf %72, %73 : vector<2x32xf32>
    %c0_62 = arith.constant 0 : index
    %c0_63 = arith.constant 0 : index
    %75 = vector.load %arg21[%c0_62, %c0_63] : memref<32x1xf32, #tpu.memory_space<vmem>>, vector<32x1xf32>
    %cst_64 = arith.constant dense<0.000000e+00> : vector<2x1xf32>
    %76 = tpu.matmul %74, %75, %cst_64 {dimension_numbers = #tpu.dot_dimension_numbers<[1], [0], [0], [1], [0, 0, 1, 1], [], []>} : vector<2x32xf32>, vector<32x1xf32>, vector<2x1xf32> -> vector<2x1xf32>
    %c0_65 = arith.constant 0 : index
    %c0_66 = arith.constant 0 : index
    %77 = vector.load %arg22[%c0_65, %c0_66] : memref<1x1xf32, #tpu.memory_space<vmem>>, vector<1x1xf32>
    %78 = vector.broadcast %77 : vector<1x1xf32> to vector<2x1xf32>
    %79 = arith.addf %76, %78 : vector<2x1xf32>
    %c0_67 = arith.constant 0 : index
    %c0_68 = arith.constant 0 : index
    %80 = vector.load %arg24[%c0_67, %c0_68] : memref<2x1xf32, #tpu.memory_space<vmem>>, vector<2x1xf32>
    tpu.vector_store %arg24[%c0_67, %c0_68], %79 {strides = array<i32>} : memref<2x1xf32, #tpu.memory_space<vmem>>, vector<2x1xf32>,
    return
  }
}

</mosaic_0001>

<llo_original>
// kernel: tpu_custom_call.1
$region0: #{tpu_custom_call.1}
  #allocation0 [shape = 'u32[]', space=smem, size = 0x4, offset = 0x4, fixed_abs, tag = 'smem constant byte address 0x4 - core index']
  #allocation1 [shape = 'u32[144,128]{1,0:T(1,128)}', space=vmem, size = 0x12000, scoped, tag = 'internal scratch']
  #allocation2 [shape = 'f32[1,1]{1,0:T(1,128)S(1)}', space=vmem, size = 0x200, scoped, tag = 'scoped memory for tpu_custom_call.1']
  #allocation3 [shape = 'f32[1,1]{1,0:T(1,128)S(1)}', space=vmem, size = 0x200, scoped, tag = 'scoped memory for tpu_custom_call.1']
  %s0 = inlined_call_operand.vmem [shape: bf16[16,16], index: 0, kind: input, shape index: {}]
  %s1 = inlined_call_operand.vmem [shape: f32[16,8], index: 1, kind: input, shape index: {}]
  %s2 = inlined_call_operand.vmem [shape: f32[2,16], index: 2, kind: input, shape index: {}]
  %s3 = inlined_call_operand.vmem [shape: f32[2,17], index: 3, kind: input, shape index: {}]
  %s4 = inlined_call_operand.vmem [shape: f32[8,32], index: 4, kind: input, shape index: {}]
  %s5 = inlined_call_operand.vmem [shape: f32[8,32], index: 5, kind: input, shape index: {}]
  %s6 = inlined_call_operand.vmem [shape: f32[1,32], index: 6, kind: input, shape index: {}]
  %s7 = inlined_call_operand.vmem [shape: f32[32,32], index: 7, kind: input, shape index: {}]
  %s8 = inlined_call_operand.vmem [shape: f32[32,32], index: 8, kind: input, shape index: {}]
  %s9 = inlined_call_operand.vmem [shape: f32[1,32], index: 9, kind: input, shape index: {}]
  %s10 = inlined_call_operand.vmem [shape: f32[32,32], index: 10, kind: input, shape index: {}]
  %s11 = inlined_call_operand.vmem [shape: f32[32,32], index: 11, kind: input, shape index: {}]
  %s12 = inlined_call_operand.vmem [shape: f32[1,32], index: 12, kind: input, shape index: {}]
  %s13 = inlined_call_operand.vmem [shape: f32[96,64], index: 13, kind: input, shape index: {}]
  %s14 = inlined_call_operand.vmem [shape: f32[1,64], index: 14, kind: input, shape index: {}]
  %s15 = inlined_call_operand.vmem [shape: f32[64,16], index: 15, kind: input, shape index: {}]
  %s16 = inlined_call_operand.vmem [shape: f32[1,16], index: 16, kind: input, shape index: {}]
  %s17 = inlined_call_operand.vmem [shape: f32[16,1], index: 17, kind: input, shape index: {}]
  %s18 = inlined_call_operand.<no memory space> [shape: f32[1,1], index: 18, kind: input, shape index: {}]
  %s19 = inlined_call_operand.vmem [shape: f32[114,32], index: 19, kind: input, shape index: {}]
  %s20 = inlined_call_operand.vmem [shape: f32[1,32], index: 20, kind: input, shape index: {}]
  %s21 = inlined_call_operand.vmem [shape: f32[32,1], index: 21, kind: input, shape index: {}]
  %s22 = inlined_call_operand.<no memory space> [shape: f32[1,1], index: 22, kind: input, shape index: {}]
  %s23 = inlined_call_operand.vmem [shape: f32[16,1], index: 23, kind: output, shape index: {0}]
  %s24 = inlined_call_operand.vmem [shape: f32[2,1], index: 24, kind: output, shape index: {1}]
  %25 = xla_tuple %s23, %s24
  %s26 = sld [smem:[#allocation0]]
  $region110: #{tpu_custom_call.1} parent=0
    _
  %s28 = ssub.s32 1, %s26
  %s29 = scalar_select 0, %s28, %s26
  %v30 = vstv %s18
  %31 = vst [vmem:[#allocation2] sm:$0x1] %v30
  %v32 = vstv %s22
  %33 = vst [vmem:[#allocation3] sm:$0x1] %v32
  // Predicated region
  $region2: #{tpu_custom_call.1} parent=0 // pred_check
    _
  $region3: #{tpu_custom_call.1} parent=0 // pred_check_branch
    %35 = sbr.rel (0) target = $region5
  $region4: #{tpu_custom_call.1} parent=0 // pred_region
    _
  $region5: #{tpu_custom_call.1} parent=0 // pred_fallthru
    _
  // Predicated region
  $region6: #{tpu_custom_call.1} parent=0 // pred_check
    _
  $region7: #{tpu_custom_call.1} parent=0 // pred_check_branch
    %37 = sbr.rel (0) target = $region9
  $region8: #{tpu_custom_call.1} parent=0 // pred_region
    _
  $region9: #{tpu_custom_call.1} parent=0 // pred_fallthru
    _
  // Predicated region
  $region10: #{tpu_custom_call.1} parent=0 // pred_check
    _
  $region11: #{tpu_custom_call.1} parent=0 // pred_check_branch
    %39 = sbr.rel (0) target = $region13
  $region12: #{tpu_custom_call.1} parent=0 // pred_region
    _
  $region13: #{tpu_custom_call.1} parent=0 // pred_fallthru
    _
  // Predicated region
  $region14: #{tpu_custom_call.1} parent=0 // pred_check
    _
  $region15: #{tpu_custom_call.1} parent=0 // pred_check_branch
    %41 = sbr.rel (0) target = $region17
  $region16: #{tpu_custom_call.1} parent=0 // pred_region
    _
  $region17: #{tpu_custom_call.1} parent=0 // pred_fallthru
    _
  // Predicated region
  $region18: #{tpu_custom_call.1} parent=0 // pred_check
    _
  $region19: #{tpu_custom_call.1} parent=0 // pred_check_branch
    %43 = sbr.rel (0) target = $region21
  $region20: #{tpu_custom_call.1} parent=0 // pred_region
    _
  $region21: #{tpu_custom_call.1} parent=0 // pred_fallthru
    _
  // Predicated region
  $region22: #{tpu_custom_call.1} parent=0 // pred_check
    _
  $region23: #{tpu_custom_call.1} parent=0 // pred_check_branch
    %45 = sbr.rel (0) target = $region25
  $region24: #{tpu_custom_call.1} parent=0 // pred_region
    _
  $region25: #{tpu_custom_call.1} parent=0 // pred_fallthru
    _
  // Predicated region
  $region26: #{tpu_custom_call.1} parent=0 // pred_check
    _
  $region27: #{tpu_custom_call.1} parent=0 // pred_check_branch
    %47 = sbr.rel (0) target = $region29
  $region28: #{tpu_custom_call.1} parent=0 // pred_region
    _
  $region29: #{tpu_custom_call.1} parent=0 // pred_fallthru
    _
  // Predicated region
  $region30: #{tpu_custom_call.1} parent=0 // pred_check
    _
  $region31: #{tpu_custom_call.1} parent=0 // pred_check_branch
    %49 = sbr.rel (0) target = $region33
  $region32: #{tpu_custom_call.1} parent=0 // pred_region
    _
  $region33: #{tpu_custom_call.1} parent=0 // pred_fallthru
    _
  // Predicated region
  $region34: #{tpu_custom_call.1} parent=0 // pred_check
    _
  $region35: #{tpu_custom_call.1} parent=0 // pred_check_branch
    %51 = sbr.rel (0) target = $region37
  $region36: #{tpu_custom_call.1} parent=0 // pred_region
    _
  $region37: #{tpu_custom_call.1} parent=0 // pred_fallthru
    _
  // Predicated region
  $region38: #{tpu_custom_call.1} parent=0 // pred_check
    _
  $region39: #{tpu_custom_call.1} parent=0 // pred_check_branch
    %53 = sbr.rel (0) target = $region41
  $region40: #{tpu_custom_call.1} parent=0 // pred_region
    _
  $region41: #{tpu_custom_call.1} parent=0 // pred_fallthru
    _
  // Predicated region
  $region42: #{tpu_custom_call.1} parent=0 // pred_check
    _
  $region43: #{tpu_custom_call.1} parent=0 // pred_check_branch
    %55 = sbr.rel (0) target = $region45
  $region44: #{tpu_custom_call.1} parent=0 // pred_region
    _
  $region45: #{tpu_custom_call.1} parent=0 // pred_fallthru
    _
  // Predicated region
  $region46: #{tpu_custom_call.1} parent=0 // pred_check
    _
  $region47: #{tpu_custom_call.1} parent=0 // pred_check_branch
    %57 = sbr.rel (0) target = $region49
  $region48: #{tpu_custom_call.1} parent=0 // pred_region
    _
  $region49: #{tpu_custom_call.1} parent=0 // pred_fallthru
    _
  // Predicated region
  $region50: #{tpu_custom_call.1} parent=0 // pred_check
    _
  $region51: #{tpu_custom_call.1} parent=0 // pred_check_branch
    %59 = sbr.rel (0) target = $region53
  $region52: #{tpu_custom_call.1} parent=0 // pred_region
    _
  $region53: #{tpu_custom_call.1} parent=0 // pred_fallthru
    _
  // Predicated region
  $region54: #{tpu_custom_call.1} parent=0 // pred_check
    _
  $region55: #{tpu_custom_call.1} parent=0 // pred_check_branch
    %61 = sbr.rel (0) target = $region57
  $region56: #{tpu_custom_call.1} parent=0 // pred_region
    _
  $region57: #{tpu_custom_call.1} parent=0 // pred_fallthru
    _
  // Predicated region
  $region58: #{tpu_custom_call.1} parent=0 // pred_check
    _
  $region59: #{tpu_custom_call.1} parent=0 // pred_check_branch
    %63 = sbr.rel (0) target = $region61
  $region60: #{tpu_custom_call.1} parent=0 // pred_region
    _
  $region61: #{tpu_custom_call.1} parent=0 // pred_fallthru
    _
  // Predicated region
  $region62: #{tpu_custom_call.1} parent=0 // pred_check
    _
  $region63: #{tpu_custom_call.1} parent=0 // pred_check_branch
    %65 = sbr.rel (0) target = $region65
  $region64: #{tpu_custom_call.1} parent=0 // pred_region
    _
  $region65: #{tpu_custom_call.1} parent=0 // pred_fallthru
    _
  // Predicated region
  $region66: #{tpu_custom_call.1} parent=0 // pred_check
    _
  $region67: #{tpu_custom_call.1} parent=0 // pred_check_branch
    %67 = sbr.rel (0) target = $region69
  $region68: #{tpu_custom_call.1} parent=0 // pred_region
    _
  $region69: #{tpu_custom_call.1} parent=0 // pred_fallthru
    _
  // Predicated region
  $region70: #{tpu_custom_call.1} parent=0 // pred_check
    _
  $region71: #{tpu_custom_call.1} parent=0 // pred_check_branch
    %69 = sbr.rel (0) target = $region73
  $region72: #{tpu_custom_call.1} parent=0 // pred_region
    _
  $region73: #{tpu_custom_call.1} parent=0 // pred_fallthru
    _
  // Predicated region
  $region74: #{tpu_custom_call.1} parent=0 // pred_check
    _
  $region75: #{tpu_custom_call.1} parent=0 // pred_check_branch
    %71 = sbr.rel (0) target = $region77
  $region76: #{tpu_custom_call.1} parent=0 // pred_region
    _
  $region77: #{tpu_custom_call.1} parent=0 // pred_fallthru
    _
  // Predicated region
  $region78: #{tpu_custom_call.1} parent=0 // pred_check
    _
  $region79: #{tpu_custom_call.1} parent=0 // pred_check_branch
    %73 = sbr.rel (0) target = $region81
  $region80: #{tpu_custom_call.1} parent=0 // pred_region
    _
  $region81: #{tpu_custom_call.1} parent=0 // pred_fallthru
    _
  // Predicated region
  $region82: #{tpu_custom_call.1} parent=0 // pred_check
    _
  $region83: #{tpu_custom_call.1} parent=0 // pred_check_branch
    %75 = sbr.rel (0) target = $region85
  $region84: #{tpu_custom_call.1} parent=0 // pred_region
    _
  $region85: #{tpu_custom_call.1} parent=0 // pred_fallthru
    _
  // Predicated region
  $region86: #{tpu_custom_call.1} parent=0 // pred_check
    _
  $region87: #{tpu_custom_call.1} parent=0 // pred_check_branch
    %77 = sbr.rel (0) target = $region89
  $region88: #{tpu_custom_call.1} parent=0 // pred_region
    _
  $region89: #{tpu_custom_call.1} parent=0 // pred_fallthru
    _
  // Predicated region
  $region90: #{tpu_custom_call.1} parent=0 // pred_check
    _
  $region91: #{tpu_custom_call.1} parent=0 // pred_check_branch
    %79 = sbr.rel (0) target = $region93
  $region92: #{tpu_custom_call.1} parent=0 // pred_region
    _
  $region93: #{tpu_custom_call.1} parent=0 // pred_fallthru
    _
  %v81 = vld [vmem:[%s0] sm:$0xf]
  %v82 = vld [vmem:[%s0 + $0x4] sm:$0xf]
  %v83 = vld [vmem:[%s1] sm:$0xff]
  %v84 = vld [vmem:[%s1 + $0x8] sm:$0xff]
  %v85 = vld [vmem:[%s4] sm:$0xff]
  %v86 = vld [vmem:[%s5] sm:$0xff]
  %v87 = vld [vmem:[%s6] sm:$0x1]
  %v88 = vpack.c.bf16 %v84, %v83
  %v91 = vunpack.c.l.b16 %v81
  %v92 = vunpack.c.l.b16 %v82
  %v93 = vpack.c.b16 %v92, %v91
  %vm94 = vcmask 130048
  %v96 = vsel %vm94, %v93, 0
  %98 = vmatprep.subr.bf16.mxu0 0
  %99 = vmatpush1.bf16.msra.mxu0 0
  %100 = vmatprep.subr.bf16.mxu0 0
  %101 = vmatpush1.bf16.msra.mxu0 0
  %102 = vmatprep.subr.bf16.mxu0 0
  %103 = vmatpush1.bf16.msra.mxu0 0
  %104 = vmatprep.subr.bf16.mxu0 0
  %105 = vmatpush1.bf16.msra.mxu0 0
  %106 = vmatprep.subr.bf16.mxu0 0
  %107 = vmatpush1.bf16.msra.mxu0 0
  %108 = vmatprep.subr.bf16.mxu0 0
  %109 = vmatpush1.bf16.msra.mxu0 0
  %110 = vmatprep.subr.bf16.mxu0 0
  %111 = vmatpush1.bf16.msra.mxu0 0
  %112 = vmatprep.subr.bf16.mxu0 0
  %113 = vmatpush1.bf16.msra.mxu0 %v88
  %114 = vmatprep.subr.bf16.mxu0 0
  %115 = vmatpush2.bf16.msra.mxu0 0
  %116 = vmatprep.subr.bf16.mxu0 0
  %117 = vmatpush2.bf16.msra.mxu0 0
  %118 = vmatprep.subr.bf16.mxu0 0
  %119 = vmatpush2.bf16.msra.mxu0 0
  %120 = vmatprep.subr.bf16.mxu0 0
  %121 = vmatpush2.bf16.msra.mxu0 0
  %122 = vmatprep.subr.bf16.mxu0 0
  %123 = vmatpush2.bf16.msra.mxu0 0
  %124 = vmatprep.subr.bf16.mxu0 0
  %125 = vmatpush2.bf16.msra.mxu0 0
  %126 = vmatprep.subr.bf16.mxu0 0
  %127 = vmatpush2.bf16.msra.mxu0 0
  %128 = vmatprep.subr.bf16.mxu0 0
  %129 = vmatpush2.bf16.msra.mxu0 0
  %130 = vmatprep.mubr.bf16.mxu0 0
  %131 = vmatmul.mubr.bf16.gmra.mxu0 %v96
  %v132 = vpop.f32.mrf.mxu0
  %v133 = vadd.f32 0.0, %v132
  %v134 = vpop.f32.mrf.mxu0
  %v135 = vpop.f32.mrf.mxu0
  %v136 = vadd.f32 0.0, %v135
  %v137 = vpop.f32.mrf.mxu0
  %138 = vdwg.mxu0
  %vm139 = vcmask 64512
  %v141 = vsel %vm139, %v83, 0
  %v144 = vsel %vm139, %v84, 0
  %146 = vmatprep.subr.mxu0 0.0
  %147 = vmatpush1.msra.mxu0 0.0
  %148 = vmatprep.subr.mxu0 0.0
  %149 = vmatpush1.msra.mxu0 0.0
  %150 = vmatprep.subr.mxu0 0.0
  %151 = vmatpush1.msra.mxu0 0.0
  %152 = vmatprep.subr.mxu0 0.0
  %153 = vmatpush1.msra.mxu0 0.0
  %154 = vmatprep.subr.mxu0 0.0
  %155 = vmatpush1.msra.mxu0 0.0
  %156 = vmatprep.subr.mxu0 0.0
  %157 = vmatpush1.msra.mxu0 0.0
  %158 = vmatprep.subr.mxu0 0.0
  %159 = vmatpush1.msra.mxu0 0.0
  %160 = vmatprep.subr.mxu0 0.0
  %161 = vmatpush1.msra.mxu0 0.0
  %162 = vmatprep.subr.mxu0 0.0
  %163 = vmatpush1.msra.mxu0 0.0
  %164 = vmatprep.subr.mxu0 0.0
  %165 = vmatpush1.msra.mxu0 0.0
  %166 = vmatprep.subr.mxu0 0.0
  %167 = vmatpush1.msra.mxu0 0.0
  %168 = vmatprep.subr.mxu0 0.0
  %169 = vmatpush1.msra.mxu0 0.0
  %170 = vmatprep.subr.mxu0 0.0
  %171 = vmatpush1.msra.mxu0 0.0
  %172 = vmatprep.subr.mxu0 0.0
  %173 = vmatpush1.msra.mxu0 0.0
  %174 = vmatprep.subr.mxu0 0.0
  %175 = vmatpush1.msra.mxu0 0.0
  %176 = vmatprep.subr.mxu0 0.0
  %177 = vmatpush1.msra.mxu0 %v86
  %178 = vmatprep.subr.mxu0 0.0
  %179 = vmatpush2.msra.mxu0 0.0
  %180 = vmatprep.subr.mxu0 0.0
  %181 = vmatpush2.msra.mxu0 0.0
  %182 = vmatprep.subr.mxu0 0.0
  %183 = vmatpush2.msra.mxu0 0.0
  %184 = vmatprep.subr.mxu0 0.0
  %185 = vmatpush2.msra.mxu0 0.0
  %186 = vmatprep.subr.mxu0 0.0
  %187 = vmatpush2.msra.mxu0 0.0
  %188 = vmatprep.subr.mxu0 0.0
  %189 = vmatpush2.msra.mxu0 0.0
  %190 = vmatprep.subr.mxu0 0.0
  %191 = vmatpush2.msra.mxu0 0.0
  %192 = vmatprep.subr.mxu0 0.0
  %193 = vmatpush2.msra.mxu0 0.0
  %194 = vmatprep.subr.mxu0 0.0
  %195 = vmatpush2.msra.mxu0 0.0
  %196 = vmatprep.subr.mxu0 0.0
  %197 = vmatpush2.msra.mxu0 0.0
  %198 = vmatprep.subr.mxu0 0.0
  %199 = vmatpush2.msra.mxu0 0.0
  %200 = vmatprep.subr.mxu0 0.0
  %201 = vmatpush2.msra.mxu0 0.0
  %202 = vmatprep.subr.mxu0 0.0
  %203 = vmatpush2.msra.mxu0 0.0
  %204 = vmatprep.subr.mxu0 0.0
  %205 = vmatpush2.msra.mxu0 0.0
  %206 = vmatprep.subr.mxu0 0.0
  %207 = vmatpush2.msra.mxu0 0.0
  %208 = vmatprep.subr.mxu0 0.0
  %209 = vmatpush2.msra.mxu0 0.0
  %210 = vmatprep.mubr.f32.mxu0 0.0
  %211 = vmatmul.mubr.f32.gmra.mxu0 %v141
  %v212 = vpop.f32.mrf.mxu0
  %v213 = vadd.f32 0.0, %v212
  %v214 = vpop.f32.mrf.mxu0
  %215 = vmatprep.mubr.f32.mxu0 0.0
  %216 = vmatmul.mubr.f32.gmra.mxu0 %v144
  %v217 = vpop.f32.mrf.mxu0
  %v218 = vadd.f32 0.0, %v217
  %v219 = vpop.f32.mrf.mxu0
  %220 = vdwg.mxu0
  %v222 = vsel %vm139, %v133, 0
  %v225 = vsel %vm139, %v136, 0
  %227 = vmatprep.subr.mxu0 0.0
  %228 = vmatpush1.msra.mxu0 0.0
  %229 = vmatprep.subr.mxu0 0.0
  %230 = vmatpush1.msra.mxu0 0.0
  %231 = vmatprep.subr.mxu0 0.0
  %232 = vmatpush1.msra.mxu0 0.0
  %233 = vmatprep.subr.mxu0 0.0
  %234 = vmatpush1.msra.mxu0 0.0
  %235 = vmatprep.subr.mxu0 0.0
  %236 = vmatpush1.msra.mxu0 0.0
  %237 = vmatprep.subr.mxu0 0.0
  %238 = vmatpush1.msra.mxu0 0.0
  %239 = vmatprep.subr.mxu0 0.0
  %240 = vmatpush1.msra.mxu0 0.0
  %241 = vmatprep.subr.mxu0 0.0
  %242 = vmatpush1.msra.mxu0 0.0
  %243 = vmatprep.subr.mxu0 0.0
  %244 = vmatpush1.msra.mxu0 0.0
  %245 = vmatprep.subr.mxu0 0.0
  %246 = vmatpush1.msra.mxu0 0.0
  %247 = vmatprep.subr.mxu0 0.0
  %248 = vmatpush1.msra.mxu0 0.0
  %249 = vmatprep.subr.mxu0 0.0
  %250 = vmatpush1.msra.mxu0 0.0
  %251 = vmatprep.subr.mxu0 0.0
  %252 = vmatpush1.msra.mxu0 0.0
  %253 = vmatprep.subr.mxu0 0.0
  %254 = vmatpush1.msra.mxu0 0.0
  %255 = vmatprep.subr.mxu0 0.0
  %256 = vmatpush1.msra.mxu0 0.0
  %257 = vmatprep.subr.mxu0 0.0
  %258 = vmatpush1.msra.mxu0 %v85
  %259 = vmatprep.subr.mxu0 0.0
  %260 = vmatpush2.msra.mxu0 0.0
  %261 = vmatprep.subr.mxu0 0.0
  %262 = vmatpush2.msra.mxu0 0.0
  %263 = vmatprep.subr.mxu0 0.0
  %264 = vmatpush2.msra.mxu0 0.0
  %265 = vmatprep.subr.mxu0 0.0
  %266 = vmatpush2.msra.mxu0 0.0
  %267 = vmatprep.subr.mxu0 0.0
  %268 = vmatpush2.msra.mxu0 0.0
  %269 = vmatprep.subr.mxu0 0.0
  %270 = vmatpush2.msra.mxu0 0.0
  %271 = vmatprep.subr.mxu0 0.0
  %272 = vmatpush2.msra.mxu0 0.0
  %273 = vmatprep.subr.mxu0 0.0
  %274 = vmatpush2.msra.mxu0 0.0
  %275 = vmatprep.subr.mxu0 0.0
  %276 = vmatpush2.msra.mxu0 0.0
  %277 = vmatprep.subr.mxu0 0.0
  %278 = vmatpush2.msra.mxu0 0.0
  %279 = vmatprep.subr.mxu0 0.0
  %280 = vmatpush2.msra.mxu0 0.0
  %281 = vmatprep.subr.mxu0 0.0
  %282 = vmatpush2.msra.mxu0 0.0
  %283 = vmatprep.subr.mxu0 0.0
  %284 = vmatpush2.msra.mxu0 0.0
  %285 = vmatprep.subr.mxu0 0.0
  %286 = vmatpush2.msra.mxu0 0.0
  %287 = vmatprep.subr.mxu0 0.0
  %288 = vmatpush2.msra.mxu0 0.0
  %289 = vmatprep.subr.mxu0 0.0
  %290 = vmatpush2.msra.mxu0 0.0
  %291 = vmatprep.mubr.f32.mxu0 0.0
  %292 = vmatmul.mubr.f32.gmra.mxu0 %v222
  %v293 = vpop.f32.mrf.mxu0
  %v294 = vadd.f32 %v213, %v293
  %v295 = vpop.f32.mrf.mxu0
  %296 = vmatprep.mubr.f32.mxu0 0.0
  %297 = vmatmul.mubr.f32.gmra.mxu0 %v225
  %v298 = vpop.f32.mrf.mxu0
  %v299 = vadd.f32 %v218, %v298
  %v300 = vpop.f32.mrf.mxu0
  %301 = vdwg.mxu0
  %v303 = vlaneseq
  %v304 = vshrl.u32 %v303, 7
  %v305 = vsub.s32 0, %v304
  %v306 = vrot.slane %v87, %v305
  %v308 = vadd.f32 %v294, %v306
  %v309 = vadd.f32 %v299, %v306
  %v310 = vmax.f32 %v308, 0.0
  %v311 = vmax.f32 %v309, 0.0
  %v312 = vld [vmem:[%s7] sm:$0xff]
  %v313 = vld [vmem:[%s7 + $0x8] sm:$0xff]
  %v314 = vld [vmem:[%s7 + $0x10] sm:$0xff]
  %v315 = vld [vmem:[%s7 + $0x18] sm:$0xff]
  %v316 = vld [vmem:[%s8] sm:$0xff]
  %v317 = vld [vmem:[%s8 + $0x8] sm:$0xff]
  %v318 = vld [vmem:[%s8 + $0x10] sm:$0xff]
  %v319 = vld [vmem:[%s8 + $0x18] sm:$0xff]
  %v320 = vld [vmem:[%s9] sm:$0x1]
  %v321 = vpack.c.bf16 %v311, %v310
  %322 = vmatprep.subr.bf16.mxu0 0
  %323 = vmatpush1.bf16.msra.mxu0 0
  %324 = vmatprep.subr.bf16.mxu0 0
  %325 = vmatpush1.bf16.msra.mxu0 0
  %326 = vmatprep.subr.bf16.mxu0 0
  %327 = vmatpush1.bf16.msra.mxu0 0
  %328 = vmatprep.subr.bf16.mxu0 0
  %329 = vmatpush1.bf16.msra.mxu0 0
  %330 = vmatprep.subr.bf16.mxu0 0
  %331 = vmatpush1.bf16.msra.mxu0 0
  %332 = vmatprep.subr.bf16.mxu0 0
  %333 = vmatpush1.bf16.msra.mxu0 0
  %334 = vmatprep.subr.bf16.mxu0 0
  %335 = vmatpush1.bf16.msra.mxu0 0
  %336 = vmatprep.subr.bf16.mxu0 0
  %337 = vmatpush1.bf16.msra.mxu0 %v321
  %338 = vmatprep.subr.bf16.mxu0 0
  %339 = vmatpush2.bf16.msra.mxu0 0
  %340 = vmatprep.subr.bf16.mxu0 0
  %341 = vmatpush2.bf16.msra.mxu0 0
  %342 = vmatprep.subr.bf16.mxu0 0
  %343 = vmatpush2.bf16.msra.mxu0 0
  %344 = vmatprep.subr.bf16.mxu0 0
  %345 = vmatpush2.bf16.msra.mxu0 0
  %346 = vmatprep.subr.bf16.mxu0 0
  %347 = vmatpush2.bf16.msra.mxu0 0
  %348 = vmatprep.subr.bf16.mxu0 0
  %349 = vmatpush2.bf16.msra.mxu0 0
  %350 = vmatprep.subr.bf16.mxu0 0
  %351 = vmatpush2.bf16.msra.mxu0 0
  %352 = vmatprep.subr.bf16.mxu0 0
  %353 = vmatpush2.bf16.msra.mxu0 0
  %354 = vmatprep.mubr.bf16.mxu0 0
  %355 = vmatmul.mubr.bf16.gmra.mxu0 %v96
  %v356 = vpop.f32.mrf.mxu0
  %v357 = vadd.f32 0.0, %v356
  %v358 = vpop.f32.mrf.mxu0
  %v359 = vpop.f32.mrf.mxu0
  %v360 = vadd.f32 0.0, %v359
  %v361 = vpop.f32.mrf.mxu0
  %362 = vdwg.mxu0
  %vm363 = vcmask 261120
  %v365 = vsel %vm363, %v310, 0
  %v368 = vsel %vm363, %v311, 0
  %370 = vmatprep.subr.mxu0 0.0
  %371 = vmatpush1.msra.mxu0 0.0
  %372 = vmatprep.subr.mxu0 0.0
  %373 = vmatpush1.msra.mxu0 0.0
  %374 = vmatprep.subr.mxu0 0.0
  %375 = vmatpush1.msra.mxu0 0.0
  %376 = vmatprep.subr.mxu0 0.0
  %377 = vmatpush1.msra.mxu0 0.0
  %378 = vmatprep.subr.mxu0 0.0
  %379 = vmatpush1.msra.mxu0 0.0
  %380 = vmatprep.subr.mxu0 0.0
  %381 = vmatpush1.msra.mxu0 0.0
  %382 = vmatprep.subr.mxu0 0.0
  %383 = vmatpush1.msra.mxu0 0.0
  %384 = vmatprep.subr.mxu0 0.0
  %385 = vmatpush1.msra.mxu0 0.0
  %386 = vmatprep.subr.mxu0 0.0
  %387 = vmatpush1.msra.mxu0 0.0
  %388 = vmatprep.subr.mxu0 0.0
  %389 = vmatpush1.msra.mxu0 0.0
  %390 = vmatprep.subr.mxu0 0.0
  %391 = vmatpush1.msra.mxu0 0.0
  %392 = vmatprep.subr.mxu0 0.0
  %393 = vmatpush1.msra.mxu0 0.0
  %394 = vmatprep.subr.mxu0 0.0
  %395 = vmatpush1.msra.mxu0 %v319
  %396 = vmatprep.subr.mxu0 0.0
  %397 = vmatpush1.msra.mxu0 %v318
  %398 = vmatprep.subr.mxu0 0.0
  %399 = vmatpush1.msra.mxu0 %v317
  %400 = vmatprep.subr.mxu0 0.0
  %401 = vmatpush1.msra.mxu0 %v316
  %402 = vmatprep.subr.mxu0 0.0
  %403 = vmatpush2.msra.mxu0 0.0
  %404 = vmatprep.subr.mxu0 0.0
  %405 = vmatpush2.msra.mxu0 0.0
  %406 = vmatprep.subr.mxu0 0.0
  %407 = vmatpush2.msra.mxu0 0.0
  %408 = vmatprep.subr.mxu0 0.0
  %409 = vmatpush2.msra.mxu0 0.0
  %410 = vmatprep.subr.mxu0 0.0
  %411 = vmatpush2.msra.mxu0 0.0
  %412 = vmatprep.subr.mxu0 0.0
  %413 = vmatpush2.msra.mxu0 0.0
  %414 = vmatprep.subr.mxu0 0.0
  %415 = vmatpush2.msra.mxu0 0.0
  %416 = vmatprep.subr.mxu0 0.0
  %417 = vmatpush2.msra.mxu0 0.0
  %418 = vmatprep.subr.mxu0 0.0
  %419 = vmatpush2.msra.mxu0 0.0
  %420 = vmatprep.subr.mxu0 0.0
  %421 = vmatpush2.msra.mxu0 0.0
  %422 = vmatprep.subr.mxu0 0.0
  %423 = vmatpush2.msra.mxu0 0.0
  %424 = vmatprep.subr.mxu0 0.0
  %425 = vmatpush2.msra.mxu0 0.0
  %426 = vmatprep.subr.mxu0 0.0
  %427 = vmatpush2.msra.mxu0 0.0
  %428 = vmatprep.subr.mxu0 0.0
  %429 = vmatpush2.msra.mxu0 0.0
  %430 = vmatprep.subr.mxu0 0.0
  %431 = vmatpush2.msra.mxu0 0.0
  %432 = vmatprep.subr.mxu0 0.0
  %433 = vmatpush2.msra.mxu0 0.0
  %434 = vmatprep.mubr.f32.mxu0 0.0
  %435 = vmatmul.mubr.f32.gmra.mxu0 %v365
  %v436 = vpop.f32.mrf.mxu0
  %v437 = vadd.f32 0.0, %v436
  %v438 = vpop.f32.mrf.mxu0
  %439 = vmatprep.mubr.f32.mxu0 0.0
  %440 = vmatmul.mubr.f32.gmra.mxu0 %v368
  %v441 = vpop.f32.mrf.mxu0
  %v442 = vadd.f32 0.0, %v441
  %v443 = vpop.f32.mrf.mxu0
  %444 = vdwg.mxu0
  %v446 = vsel %vm363, %v357, 0
  %v449 = vsel %vm363, %v360, 0
  %451 = vmatprep.subr.mxu0 0.0
  %452 = vmatpush1.msra.mxu0 0.0
  %453 = vmatprep.subr.mxu0 0.0
  %454 = vmatpush1.msra.mxu0 0.0
  %455 = vmatprep.subr.mxu0 0.0
  %456 = vmatpush1.msra.mxu0 0.0
  %457 = vmatprep.subr.mxu0 0.0
  %458 = vmatpush1.msra.mxu0 0.0
  %459 = vmatprep.subr.mxu0 0.0
  %460 = vmatpush1.msra.mxu0 0.0
  %461 = vmatprep.subr.mxu0 0.0
  %462 = vmatpush1.msra.mxu0 0.0
  %463 = vmatprep.subr.mxu0 0.0
  %464 = vmatpush1.msra.mxu0 0.0
  %465 = vmatprep.subr.mxu0 0.0
  %466 = vmatpush1.msra.mxu0 0.0
  %467 = vmatprep.subr.mxu0 0.0
  %468 = vmatpush1.msra.mxu0 0.0
  %469 = vmatprep.subr.mxu0 0.0
  %470 = vmatpush1.msra.mxu0 0.0
  %471 = vmatprep.subr.mxu0 0.0
  %472 = vmatpush1.msra.mxu0 0.0
  %473 = vmatprep.subr.mxu0 0.0
  %474 = vmatpush1.msra.mxu0 0.0
  %475 = vmatprep.subr.mxu0 0.0
  %476 = vmatpush1.msra.mxu0 %v315
  %477 = vmatprep.subr.mxu0 0.0
  %478 = vmatpush1.msra.mxu0 %v314
  %479 = vmatprep.subr.mxu0 0.0
  %480 = vmatpush1.msra.mxu0 %v313
  %481 = vmatprep.subr.mxu0 0.0
  %482 = vmatpush1.msra.mxu0 %v312
  %483 = vmatprep.subr.mxu0 0.0
  %484 = vmatpush2.msra.mxu0 0.0
  %485 = vmatprep.subr.mxu0 0.0
  %486 = vmatpush2.msra.mxu0 0.0
  %487 = vmatprep.subr.mxu0 0.0
  %488 = vmatpush2.msra.mxu0 0.0
  %489 = vmatprep.subr.mxu0 0.0
  %490 = vmatpush2.msra.mxu0 0.0
  %491 = vmatprep.subr.mxu0 0.0
  %492 = vmatpush2.msra.mxu0 0.0
  %493 = vmatprep.subr.mxu0 0.0
  %494 = vmatpush2.msra.mxu0 0.0
  %495 = vmatprep.subr.mxu0 0.0
  %496 = vmatpush2.msra.mxu0 0.0
  %497 = vmatprep.subr.mxu0 0.0
  %498 = vmatpush2.msra.mxu0 0.0
  %499 = vmatprep.subr.mxu0 0.0
  %500 = vmatpush2.msra.mxu0 0.0
  %501 = vmatprep.subr.mxu0 0.0
  %502 = vmatpush2.msra.mxu0 0.0
  %503 = vmatprep.subr.mxu0 0.0
  %504 = vmatpush2.msra.mxu0 0.0
  %505 = vmatprep.subr.mxu0 0.0
  %506 = vmatpush2.msra.mxu0 0.0
  %507 = vmatprep.subr.mxu0 0.0
  %508 = vmatpush2.msra.mxu0 0.0
  %509 = vmatprep.subr.mxu0 0.0
  %510 = vmatpush2.msra.mxu0 0.0
  %511 = vmatprep.subr.mxu0 0.0
  %512 = vmatpush2.msra.mxu0 0.0
  %513 = vmatprep.subr.mxu0 0.0
  %514 = vmatpush2.msra.mxu0 0.0
  %515 = vmatprep.mubr.f32.mxu0 0.0
  %516 = vmatmul.mubr.f32.gmra.mxu0 %v446
  %v517 = vpop.f32.mrf.mxu0
  %v518 = vadd.f32 %v437, %v517
  %v519 = vpop.f32.mrf.mxu0
  %520 = vmatprep.mubr.f32.mxu0 0.0
  %521 = vmatmul.mubr.f32.gmra.mxu0 %v449
  %v522 = vpop.f32.mrf.mxu0
  %v523 = vadd.f32 %v442, %v522
  %v524 = vpop.f32.mrf.mxu0
  %525 = vdwg.mxu0
  %v527 = vlaneseq
  %v528 = vshrl.u32 %v527, 7
  %v529 = vsub.s32 0, %v528
  %v530 = vrot.slane %v320, %v529
  %v532 = vadd.f32 %v518, %v530
  %v533 = vadd.f32 %v523, %v530
  %v534 = vmax.f32 %v532, 0.0
  %v535 = vmax.f32 %v533, 0.0
  %v536 = vld [vmem:[%s10] sm:$0xff]
  %v537 = vld [vmem:[%s10 + $0x8] sm:$0xff]
  %v538 = vld [vmem:[%s10 + $0x10] sm:$0xff]
  %v539 = vld [vmem:[%s10 + $0x18] sm:$0xff]
  %v540 = vld [vmem:[%s11] sm:$0xff]
  %v541 = vld [vmem:[%s11 + $0x8] sm:$0xff]
  %v542 = vld [vmem:[%s11 + $0x10] sm:$0xff]
  %v543 = vld [vmem:[%s11 + $0x18] sm:$0xff]
  %v544 = vld [vmem:[%s12] sm:$0x1]
  %v545 = vpack.c.bf16 %v535, %v534
  %546 = vmatprep.subr.bf16.mxu0 0
  %547 = vmatpush1.bf16.msra.mxu0 0
  %548 = vmatprep.subr.bf16.mxu0 0
  %549 = vmatpush1.bf16.msra.mxu0 0
  %550 = vmatprep.subr.bf16.mxu0 0
  %551 = vmatpush1.bf16.msra.mxu0 0
  %552 = vmatprep.subr.bf16.mxu0 0
  %553 = vmatpush1.bf16.msra.mxu0 0
  %554 = vmatprep.subr.bf16.mxu0 0
  %555 = vmatpush1.bf16.msra.mxu0 0
  %556 = vmatprep.subr.bf16.mxu0 0
  %557 = vmatpush1.bf16.msra.mxu0 0
  %558 = vmatprep.subr.bf16.mxu0 0
  %559 = vmatpush1.bf16.msra.mxu0 0
  %560 = vmatprep.subr.bf16.mxu0 0
  %561 = vmatpush1.bf16.msra.mxu0 %v545
  %562 = vmatprep.subr.bf16.mxu0 0
  %563 = vmatpush2.bf16.msra.mxu0 0
  %564 = vmatprep.subr.bf16.mxu0 0
  %565 = vmatpush2.bf16.msra.mxu0 0
  %566 = vmatprep.subr.bf16.mxu0 0
  %567 = vmatpush2.bf16.msra.mxu0 0
  %568 = vmatprep.subr.bf16.mxu0 0
  %569 = vmatpush2.bf16.msra.mxu0 0
  %570 = vmatprep.subr.bf16.mxu0 0
  %571 = vmatpush2.bf16.msra.mxu0 0
  %572 = vmatprep.subr.bf16.mxu0 0
  %573 = vmatpush2.bf16.msra.mxu0 0
  %574 = vmatprep.subr.bf16.mxu0 0
  %575 = vmatpush2.bf16.msra.mxu0 0
  %576 = vmatprep.subr.bf16.mxu0 0
  %577 = vmatpush2.bf16.msra.mxu0 0
  %578 = vmatprep.mubr.bf16.mxu0 0
  %579 = vmatmul.mubr.bf16.gmra.mxu0 %v96
  %v580 = vpop.f32.mrf.mxu0
  %v581 = vadd.f32 0.0, %v580
  %v582 = vpop.f32.mrf.mxu0
  %v583 = vpop.f32.mrf.mxu0
  %v584 = vadd.f32 0.0, %v583
  %v585 = vpop.f32.mrf.mxu0
  %586 = vdwg.mxu0
  %v588 = vsel %vm363, %v534, 0
  %v591 = vsel %vm363, %v535, 0
  %593 = vmatprep.subr.mxu0 0.0
  %594 = vmatpush1.msra.mxu0 0.0
  %595 = vmatprep.subr.mxu0 0.0
  %596 = vmatpush1.msra.mxu0 0.0
  %597 = vmatprep.subr.mxu0 0.0
  %598 = vmatpush1.msra.mxu0 0.0
  %599 = vmatprep.subr.mxu0 0.0
  %600 = vmatpush1.msra.mxu0 0.0
  %601 = vmatprep.subr.mxu0 0.0
  %602 = vmatpush1.msra.mxu0 0.0
  %603 = vmatprep.subr.mxu0 0.0
  %604 = vmatpush1.msra.mxu0 0.0
  %605 = vmatprep.subr.mxu0 0.0
  %606 = vmatpush1.msra.mxu0 0.0
  %607 = vmatprep.subr.mxu0 0.0
  %608 = vmatpush1.msra.mxu0 0.0
  %609 = vmatprep.subr.mxu0 0.0
  %610 = vmatpush1.msra.mxu0 0.0
  %611 = vmatprep.subr.mxu0 0.0
  %612 = vmatpush1.msra.mxu0 0.0
  %613 = vmatprep.subr.mxu0 0.0
  %614 = vmatpush1.msra.mxu0 0.0
  %615 = vmatprep.subr.mxu0 0.0
  %616 = vmatpush1.msra.mxu0 0.0
  %617 = vmatprep.subr.mxu0 0.0
  %618 = vmatpush1.msra.mxu0 %v543
  %619 = vmatprep.subr.mxu0 0.0
  %620 = vmatpush1.msra.mxu0 %v542
  %621 = vmatprep.subr.mxu0 0.0
  %622 = vmatpush1.msra.mxu0 %v541
  %623 = vmatprep.subr.mxu0 0.0
  %624 = vmatpush1.msra.mxu0 %v540
  %625 = vmatprep.subr.mxu0 0.0
  %626 = vmatpush2.msra.mxu0 0.0
  %627 = vmatprep.subr.mxu0 0.0
  %628 = vmatpush2.msra.mxu0 0.0
  %629 = vmatprep.subr.mxu0 0.0
  %630 = vmatpush2.msra.mxu0 0.0
  %631 = vmatprep.subr.mxu0 0.0
  %632 = vmatpush2.msra.mxu0 0.0
  %633 = vmatprep.subr.mxu0 0.0
  %634 = vmatpush2.msra.mxu0 0.0
  %635 = vmatprep.subr.mxu0 0.0
  %636 = vmatpush2.msra.mxu0 0.0
  %637 = vmatprep.subr.mxu0 0.0
  %638 = vmatpush2.msra.mxu0 0.0
  %639 = vmatprep.subr.mxu0 0.0
  %640 = vmatpush2.msra.mxu0 0.0
  %641 = vmatprep.subr.mxu0 0.0
  %642 = vmatpush2.msra.mxu0 0.0
  %643 = vmatprep.subr.mxu0 0.0
  %644 = vmatpush2.msra.mxu0 0.0
  %645 = vmatprep.subr.mxu0 0.0
  %646 = vmatpush2.msra.mxu0 0.0
  %647 = vmatprep.subr.mxu0 0.0
  %648 = vmatpush2.msra.mxu0 0.0
  %649 = vmatprep.subr.mxu0 0.0
  %650 = vmatpush2.msra.mxu0 0.0
  %651 = vmatprep.subr.mxu0 0.0
  %652 = vmatpush2.msra.mxu0 0.0
  %653 = vmatprep.subr.mxu0 0.0
  %654 = vmatpush2.msra.mxu0 0.0
  %655 = vmatprep.subr.mxu0 0.0
  %656 = vmatpush2.msra.mxu0 0.0
  %657 = vmatprep.mubr.f32.mxu0 0.0
  %658 = vmatmul.mubr.f32.gmra.mxu0 %v588
  %v659 = vpop.f32.mrf.mxu0
  %v660 = vadd.f32 0.0, %v659
  %v661 = vpop.f32.mrf.mxu0
  %662 = vmatprep.mubr.f32.mxu0 0.0
  %663 = vmatmul.mubr.f32.gmra.mxu0 %v591
  %v664 = vpop.f32.mrf.mxu0
  %v665 = vadd.f32 0.0, %v664
  %v666 = vpop.f32.mrf.mxu0
  %667 = vdwg.mxu0
  %v669 = vsel %vm363, %v581, 0
  %v672 = vsel %vm363, %v584, 0
  %674 = vmatprep.subr.mxu0 0.0
  %675 = vmatpush1.msra.mxu0 0.0
  %676 = vmatprep.subr.mxu0 0.0
  %677 = vmatpush1.msra.mxu0 0.0
  %678 = vmatprep.subr.mxu0 0.0
  %679 = vmatpush1.msra.mxu0 0.0
  %680 = vmatprep.subr.mxu0 0.0
  %681 = vmatpush1.msra.mxu0 0.0
  %682 = vmatprep.subr.mxu0 0.0
  %683 = vmatpush1.msra.mxu0 0.0
  %684 = vmatprep.subr.mxu0 0.0
  %685 = vmatpush1.msra.mxu0 0.0
  %686 = vmatprep.subr.mxu0 0.0
  %687 = vmatpush1.msra.mxu0 0.0
  %688 = vmatprep.subr.mxu0 0.0
  %689 = vmatpush1.msra.mxu0 0.0
  %690 = vmatprep.subr.mxu0 0.0
  %691 = vmatpush1.msra.mxu0 0.0
  %692 = vmatprep.subr.mxu0 0.0
  %693 = vmatpush1.msra.mxu0 0.0
  %694 = vmatprep.subr.mxu0 0.0
  %695 = vmatpush1.msra.mxu0 0.0
  %696 = vmatprep.subr.mxu0 0.0
  %697 = vmatpush1.msra.mxu0 0.0
  %698 = vmatprep.subr.mxu0 0.0
  %699 = vmatpush1.msra.mxu0 %v539
  %700 = vmatprep.subr.mxu0 0.0
  %701 = vmatpush1.msra.mxu0 %v538
  %702 = vmatprep.subr.mxu0 0.0
  %703 = vmatpush1.msra.mxu0 %v537
  %704 = vmatprep.subr.mxu0 0.0
  %705 = vmatpush1.msra.mxu0 %v536
  %706 = vmatprep.subr.mxu0 0.0
  %707 = vmatpush2.msra.mxu0 0.0
  %708 = vmatprep.subr.mxu0 0.0
  %709 = vmatpush2.msra.mxu0 0.0
  %710 = vmatprep.subr.mxu0 0.0
  %711 = vmatpush2.msra.mxu0 0.0
  %712 = vmatprep.subr.mxu0 0.0
  %713 = vmatpush2.msra.mxu0 0.0
  %714 = vmatprep.subr.mxu0 0.0
  %715 = vmatpush2.msra.mxu0 0.0
  %716 = vmatprep.subr.mxu0 0.0
  %717 = vmatpush2.msra.mxu0 0.0
  %718 = vmatprep.subr.mxu0 0.0
  %719 = vmatpush2.msra.mxu0 0.0
  %720 = vmatprep.subr.mxu0 0.0
  %721 = vmatpush2.msra.mxu0 0.0
  %722 = vmatprep.subr.mxu0 0.0
  %723 = vmatpush2.msra.mxu0 0.0
  %724 = vmatprep.subr.mxu0 0.0
  %725 = vmatpush2.msra.mxu0 0.0
  %726 = vmatprep.subr.mxu0 0.0
  %727 = vmatpush2.msra.mxu0 0.0
  %728 = vmatprep.subr.mxu0 0.0
  %729 = vmatpush2.msra.mxu0 0.0
  %730 = vmatprep.subr.mxu0 0.0
  %731 = vmatpush2.msra.mxu0 0.0
  %732 = vmatprep.subr.mxu0 0.0
  %733 = vmatpush2.msra.mxu0 0.0
  %734 = vmatprep.subr.mxu0 0.0
  %735 = vmatpush2.msra.mxu0 0.0
  %736 = vmatprep.subr.mxu0 0.0
  %737 = vmatpush2.msra.mxu0 0.0
  %738 = vmatprep.mubr.f32.mxu0 0.0
  %739 = vmatmul.mubr.f32.gmra.mxu0 %v669
  %v740 = vpop.f32.mrf.mxu0
  %v741 = vadd.f32 %v660, %v740
  %v742 = vpop.f32.mrf.mxu0
  %743 = vmatprep.mubr.f32.mxu0 0.0
  %744 = vmatmul.mubr.f32.gmra.mxu0 %v672
  %v745 = vpop.f32.mrf.mxu0
  %v746 = vadd.f32 %v665, %v745
  %v747 = vpop.f32.mrf.mxu0
  %748 = vdwg.mxu0
  %v750 = vlaneseq
  %v751 = vshrl.u32 %v750, 7
  %v752 = vsub.s32 0, %v751
  %v753 = vrot.slane %v544, %v752
  %v755 = vadd.f32 %v741, %v753
  %v756 = vadd.f32 %v746, %v753
  %v757 = vmax.f32 %v755, 0.0
  %v758 = vmax.f32 %v756, 0.0
  %759 = vrot.lane.b32.xlu0 %v534, 32
  %v760 = vpop.permute.xlu0 %759
  %761 = vrot.lane.b32.xlu0 %v535, 32
  %v762 = vpop.permute.xlu0 %761
  %767 = vrot.lane.b32.xlu0 %v757, 64
  %v768 = vpop.permute.xlu0 %767
  %769 = vrot.lane.b32.xlu0 %v758, 64
  %v770 = vpop.permute.xlu0 %769
  %v773 = vsel %vm363, %v310, %v760
  %v774 = vsel %vm363, %v311, %v762
  %vm775 = vcmask 523264
  %v776 = vsel %vm775, %v773, %v768
  %v777 = vsel %vm775, %v774, %v770
  %v778 = vld [vmem:[%s13] sm:$0xff]
  %v779 = vld [vmem:[%s13 + $0x8] sm:$0xff]
  %v780 = vld [vmem:[%s13 + $0x10] sm:$0xff]
  %v781 = vld [vmem:[%s13 + $0x18] sm:$0xff]
  %v782 = vld [vmem:[%s13 + $0x20] sm:$0xff]
  %v783 = vld [vmem:[%s13 + $0x28] sm:$0xff]
  %v784 = vld [vmem:[%s13 + $0x30] sm:$0xff]
  %v785 = vld [vmem:[%s13 + $0x38] sm:$0xff]
  %v786 = vld [vmem:[%s13 + $0x40] sm:$0xff]
  %v787 = vld [vmem:[%s13 + $0x48] sm:$0xff]
  %v788 = vld [vmem:[%s13 + $0x50] sm:$0xff]
  %v789 = vld [vmem:[%s13 + $0x58] sm:$0xff]
  %v790 = vld [vmem:[%s14] sm:$0x1]
  %v792 = vlaneseq
  %v793 = vshrl.u32 %v792, 7
  %v794 = vsub.s32 0, %v793
  %v795 = vrot.slane %v790, %v794
  %vm797 = vcmask 785408
  %v799 = vsel %vm797, %v776, 0
  %v802 = vsel %vm797, %v777, 0
  %804 = vmatprep.subr.mxu0 0.0
  %805 = vmatpush1.msra.mxu0 0.0
  %806 = vmatprep.subr.mxu0 0.0
  %807 = vmatpush1.msra.mxu0 0.0
  %808 = vmatprep.subr.mxu0 0.0
  %809 = vmatpush1.msra.mxu0 0.0
  %810 = vmatprep.subr.mxu0 0.0
  %811 = vmatpush1.msra.mxu0 0.0
  %812 = vmatprep.subr.mxu0 0.0
  %813 = vmatpush1.msra.mxu0 %v789
  %814 = vmatprep.subr.mxu0 0.0
  %815 = vmatpush1.msra.mxu0 %v788
  %816 = vmatprep.subr.mxu0 0.0
  %817 = vmatpush1.msra.mxu0 %v787
  %818 = vmatprep.subr.mxu0 0.0
  %819 = vmatpush1.msra.mxu0 %v786
  %820 = vmatprep.subr.mxu0 0.0
  %821 = vmatpush1.msra.mxu0 %v785
  %822 = vmatprep.subr.mxu0 0.0
  %823 = vmatpush1.msra.mxu0 %v784
  %824 = vmatprep.subr.mxu0 0.0
  %825 = vmatpush1.msra.mxu0 %v783
  %826 = vmatprep.subr.mxu0 0.0
  %827 = vmatpush1.msra.mxu0 %v782
  %828 = vmatprep.subr.mxu0 0.0
  %829 = vmatpush1.msra.mxu0 %v781
  %830 = vmatprep.subr.mxu0 0.0
  %831 = vmatpush1.msra.mxu0 %v780
  %832 = vmatprep.subr.mxu0 0.0
  %833 = vmatpush1.msra.mxu0 %v779
  %834 = vmatprep.subr.mxu0 0.0
  %835 = vmatpush1.msra.mxu0 %v778
  %836 = vmatprep.subr.mxu0 0.0
  %837 = vmatpush2.msra.mxu0 0.0
  %838 = vmatprep.subr.mxu0 0.0
  %839 = vmatpush2.msra.mxu0 0.0
  %840 = vmatprep.subr.mxu0 0.0
  %841 = vmatpush2.msra.mxu0 0.0
  %842 = vmatprep.subr.mxu0 0.0
  %843 = vmatpush2.msra.mxu0 0.0
  %844 = vmatprep.subr.mxu0 0.0
  %845 = vmatpush2.msra.mxu0 0.0
  %846 = vmatprep.subr.mxu0 0.0
  %847 = vmatpush2.msra.mxu0 0.0
  %848 = vmatprep.subr.mxu0 0.0
  %849 = vmatpush2.msra.mxu0 0.0
  %850 = vmatprep.subr.mxu0 0.0
  %851 = vmatpush2.msra.mxu0 0.0
  %852 = vmatprep.subr.mxu0 0.0
  %853 = vmatpush2.msra.mxu0 0.0
  %854 = vmatprep.subr.mxu0 0.0
  %855 = vmatpush2.msra.mxu0 0.0
  %856 = vmatprep.subr.mxu0 0.0
  %857 = vmatpush2.msra.mxu0 0.0
  %858 = vmatprep.subr.mxu0 0.0
  %859 = vmatpush2.msra.mxu0 0.0
  %860 = vmatprep.subr.mxu0 0.0
  %861 = vmatpush2.msra.mxu0 0.0
  %862 = vmatprep.subr.mxu0 0.0
  %863 = vmatpush2.msra.mxu0 0.0
  %864 = vmatprep.subr.mxu0 0.0
  %865 = vmatpush2.msra.mxu0 0.0
  %866 = vmatprep.subr.mxu0 0.0
  %867 = vmatpush2.msra.mxu0 0.0
  %868 = vmatprep.mubr.f32.mxu0 0.0
  %869 = vmatmul.mubr.f32.gmra.mxu0 %v799
  %v870 = vpop.f32.mrf.mxu0
  %v871 = vadd.f32 %v795, %v870
  %v872 = vpop.f32.mrf.mxu0
  %873 = vmatprep.mubr.f32.mxu0 0.0
  %874 = vmatmul.mubr.f32.gmra.mxu0 %v802
  %v875 = vpop.f32.mrf.mxu0
  %v876 = vadd.f32 %v795, %v875
  %v877 = vpop.f32.mrf.mxu0
  %878 = vdwg.mxu0
  %v879 = vmax.f32 %v871, 0.0
  %v880 = vmax.f32 %v876, 0.0
  %v881 = vld [vmem:[%s15] sm:$0xff]
  %v882 = vld [vmem:[%s15 + $0x8] sm:$0xff]
  %v883 = vld [vmem:[%s15 + $0x10] sm:$0xff]
  %v884 = vld [vmem:[%s15 + $0x18] sm:$0xff]
  %v885 = vld [vmem:[%s15 + $0x20] sm:$0xff]
  %v886 = vld [vmem:[%s15 + $0x28] sm:$0xff]
  %v887 = vld [vmem:[%s15 + $0x30] sm:$0xff]
  %v888 = vld [vmem:[%s15 + $0x38] sm:$0xff]
  %v889 = vld [vmem:[%s16] sm:$0x1]
  %v891 = vlaneseq
  %v892 = vshrl.u32 %v891, 7
  %v893 = vsub.s32 0, %v892
  %v894 = vrot.slane %v889, %v893
  %v897 = vsel %vm775, %v879, 0
  %v900 = vsel %vm775, %v880, 0
  %902 = vmatprep.subr.mxu0 0.0
  %903 = vmatpush1.msra.mxu0 0.0
  %904 = vmatprep.subr.mxu0 0.0
  %905 = vmatpush1.msra.mxu0 0.0
  %906 = vmatprep.subr.mxu0 0.0
  %907 = vmatpush1.msra.mxu0 0.0
  %908 = vmatprep.subr.mxu0 0.0
  %909 = vmatpush1.msra.mxu0 0.0
  %910 = vmatprep.subr.mxu0 0.0
  %911 = vmatpush1.msra.mxu0 0.0
  %912 = vmatprep.subr.mxu0 0.0
  %913 = vmatpush1.msra.mxu0 0.0
  %914 = vmatprep.subr.mxu0 0.0
  %915 = vmatpush1.msra.mxu0 0.0
  %916 = vmatprep.subr.mxu0 0.0
  %917 = vmatpush1.msra.mxu0 0.0
  %918 = vmatprep.subr.mxu0 0.0
  %919 = vmatpush1.msra.mxu0 %v888
  %920 = vmatprep.subr.mxu0 0.0
  %921 = vmatpush1.msra.mxu0 %v887
  %922 = vmatprep.subr.mxu0 0.0
  %923 = vmatpush1.msra.mxu0 %v886
  %924 = vmatprep.subr.mxu0 0.0
  %925 = vmatpush1.msra.mxu0 %v885
  %926 = vmatprep.subr.mxu0 0.0
  %927 = vmatpush1.msra.mxu0 %v884
  %928 = vmatprep.subr.mxu0 0.0
  %929 = vmatpush1.msra.mxu0 %v883
  %930 = vmatprep.subr.mxu0 0.0
  %931 = vmatpush1.msra.mxu0 %v882
  %932 = vmatprep.subr.mxu0 0.0
  %933 = vmatpush1.msra.mxu0 %v881
  %934 = vmatprep.subr.mxu0 0.0
  %935 = vmatpush2.msra.mxu0 0.0
  %936 = vmatprep.subr.mxu0 0.0
  %937 = vmatpush2.msra.mxu0 0.0
  %938 = vmatprep.subr.mxu0 0.0
  %939 = vmatpush2.msra.mxu0 0.0
  %940 = vmatprep.subr.mxu0 0.0
  %941 = vmatpush2.msra.mxu0 0.0
  %942 = vmatprep.subr.mxu0 0.0
  %943 = vmatpush2.msra.mxu0 0.0
  %944 = vmatprep.subr.mxu0 0.0
  %945 = vmatpush2.msra.mxu0 0.0
  %946 = vmatprep.subr.mxu0 0.0
  %947 = vmatpush2.msra.mxu0 0.0
  %948 = vmatprep.subr.mxu0 0.0
  %949 = vmatpush2.msra.mxu0 0.0
  %950 = vmatprep.subr.mxu0 0.0
  %951 = vmatpush2.msra.mxu0 0.0
  %952 = vmatprep.subr.mxu0 0.0
  %953 = vmatpush2.msra.mxu0 0.0
  %954 = vmatprep.subr.mxu0 0.0
  %955 = vmatpush2.msra.mxu0 0.0
  %956 = vmatprep.subr.mxu0 0.0
  %957 = vmatpush2.msra.mxu0 0.0
  %958 = vmatprep.subr.mxu0 0.0
  %959 = vmatpush2.msra.mxu0 0.0
  %960 = vmatprep.subr.mxu0 0.0
  %961 = vmatpush2.msra.mxu0 0.0
  %962 = vmatprep.subr.mxu0 0.0
  %963 = vmatpush2.msra.mxu0 0.0
  %964 = vmatprep.subr.mxu0 0.0
  %965 = vmatpush2.msra.mxu0 0.0
  %966 = vmatprep.mubr.f32.mxu0 0.0
  %967 = vmatmul.mubr.f32.gmra.mxu0 %v897
  %v968 = vpop.f32.mrf.mxu0
  %v969 = vadd.f32 %v894, %v968
  %v970 = vpop.f32.mrf.mxu0
  %971 = vmatprep.mubr.f32.mxu0 0.0
  %972 = vmatmul.mubr.f32.gmra.mxu0 %v900
  %v973 = vpop.f32.mrf.mxu0
  %v974 = vadd.f32 %v894, %v973
  %v975 = vpop.f32.mrf.mxu0
  %976 = vdwg.mxu0
  %v977 = vmax.f32 %v969, 0.0
  %v978 = vmax.f32 %v974, 0.0
  %v979 = vld [vmem:[%s17] sm:$0xff]
  %v980 = vld [vmem:[%s17 + $0x8] sm:$0xff]
  %v981 = vld [vmem:[#allocation2] sm:$0x1]
  %v983 = vlaneseq
  %v984 = vshrl.u32 %v983, 7
  %v985 = vsub.s32 0, %v984
  %v986 = vrot.slane %v981, %v985
  %v989 = vsel %vm94, %v977, 0
  %v992 = vsel %vm94, %v978, 0
  %994 = vmatprep.subr.mxu0 0.0
  %995 = vmatpush1.msra.mxu0 0.0
  %996 = vmatprep.subr.mxu0 0.0
  %997 = vmatpush1.msra.mxu0 0.0
  %998 = vmatprep.subr.mxu0 0.0
  %999 = vmatpush1.msra.mxu0 0.0
  %1000 = vmatprep.subr.mxu0 0.0
  %1001 = vmatpush1.msra.mxu0 0.0
  %1002 = vmatprep.subr.mxu0 0.0
  %1003 = vmatpush1.msra.mxu0 0.0
  %1004 = vmatprep.subr.mxu0 0.0
  %1005 = vmatpush1.msra.mxu0 0.0
  %1006 = vmatprep.subr.mxu0 0.0
  %1007 = vmatpush1.msra.mxu0 0.0
  %1008 = vmatprep.subr.mxu0 0.0
  %1009 = vmatpush1.msra.mxu0 0.0
  %1010 = vmatprep.subr.mxu0 0.0
  %1011 = vmatpush1.msra.mxu0 0.0
  %1012 = vmatprep.subr.mxu0 0.0
  %1013 = vmatpush1.msra.mxu0 0.0
  %1014 = vmatprep.subr.mxu0 0.0
  %1015 = vmatpush1.msra.mxu0 0.0
  %1016 = vmatprep.subr.mxu0 0.0
  %1017 = vmatpush1.msra.mxu0 0.0
  %1018 = vmatprep.subr.mxu0 0.0
  %1019 = vmatpush1.msra.mxu0 0.0
  %1020 = vmatprep.subr.mxu0 0.0
  %1021 = vmatpush1.msra.mxu0 0.0
  %1022 = vmatprep.subr.mxu0 0.0
  %1023 = vmatpush1.msra.mxu0 %v980
  %1024 = vmatprep.subr.mxu0 0.0
  %1025 = vmatpush1.msra.mxu0 %v979
  %1026 = vmatprep.subr.mxu0 0.0
  %1027 = vmatpush2.msra.mxu0 0.0
  %1028 = vmatprep.subr.mxu0 0.0
  %1029 = vmatpush2.msra.mxu0 0.0
  %1030 = vmatprep.subr.mxu0 0.0
  %1031 = vmatpush2.msra.mxu0 0.0
  %1032 = vmatprep.subr.mxu0 0.0
  %1033 = vmatpush2.msra.mxu0 0.0
  %1034 = vmatprep.subr.mxu0 0.0
  %1035 = vmatpush2.msra.mxu0 0.0
  %1036 = vmatprep.subr.mxu0 0.0
  %1037 = vmatpush2.msra.mxu0 0.0
  %1038 = vmatprep.subr.mxu0 0.0
  %1039 = vmatpush2.msra.mxu0 0.0
  %1040 = vmatprep.subr.mxu0 0.0
  %1041 = vmatpush2.msra.mxu0 0.0
  %1042 = vmatprep.subr.mxu0 0.0
  %1043 = vmatpush2.msra.mxu0 0.0
  %1044 = vmatprep.subr.mxu0 0.0
  %1045 = vmatpush2.msra.mxu0 0.0
  %1046 = vmatprep.subr.mxu0 0.0
  %1047 = vmatpush2.msra.mxu0 0.0
  %1048 = vmatprep.subr.mxu0 0.0
  %1049 = vmatpush2.msra.mxu0 0.0
  %1050 = vmatprep.subr.mxu0 0.0
  %1051 = vmatpush2.msra.mxu0 0.0
  %1052 = vmatprep.subr.mxu0 0.0
  %1053 = vmatpush2.msra.mxu0 0.0
  %1054 = vmatprep.subr.mxu0 0.0
  %1055 = vmatpush2.msra.mxu0 0.0
  %1056 = vmatprep.subr.mxu0 0.0
  %1057 = vmatpush2.msra.mxu0 0.0
  %1058 = vmatprep.mubr.f32.mxu0 0.0
  %1059 = vmatmul.mubr.f32.gmra.mxu0 %v989
  %v1060 = vpop.f32.mrf.mxu0
  %v1061 = vadd.f32 %v986, %v1060
  %v1062 = vpop.f32.mrf.mxu0
  %1063 = vmatprep.mubr.f32.mxu0 0.0
  %1064 = vmatmul.mubr.f32.gmra.mxu0 %v992
  %v1065 = vpop.f32.mrf.mxu0
  %v1066 = vadd.f32 %v986, %v1065
  %v1067 = vpop.f32.mrf.mxu0
  %1068 = vdwg.mxu0
  %vm1069 = vcmask 7168
  %1070 = vst.msk [vmem:[%s23] sm:$0xff] %vm1069, %v1061
  %1071 = vst.msk [vmem:[%s23 + $0x8] sm:$0xff] %vm1069, %v1066
  %v1072 = vmul.f32 %v1061, %v83
  %v1073 = vmul.f32 %v1066, %v84
  %1076 = vrot.lane.b32.xlu0 %v1072, 96
  %v1077 = vpop.permute.xlu0 %1076
  %1078 = vrot.lane.b32.xlu0 %v1073, 96
  %v1079 = vpop.permute.xlu0 %1078
  %v1082 = vsel %vm797, %v776, %v1077
  %v1083 = vsel %vm797, %v777, %v1079
  %v1084 = vld [vmem:[%s2] sm:$0x3]
  %v1086 = vsel %vm94, %v1084, 0
  %1088 = vmatprep.subr.mxu0 0.0
  %1089 = vmatpush1.msra.mxu0 0.0
  %1090 = vmatprep.subr.mxu0 0.0
  %1091 = vmatpush1.msra.mxu0 0.0
  %1092 = vmatprep.subr.mxu0 0.0
  %1093 = vmatpush1.msra.mxu0 0.0
  %1094 = vmatprep.subr.mxu0 0.0
  %1095 = vmatpush1.msra.mxu0 0.0
  %1096 = vmatprep.subr.mxu0 0.0
  %1097 = vmatpush1.msra.mxu0 0.0
  %1098 = vmatprep.subr.mxu0 0.0
  %1099 = vmatpush1.msra.mxu0 0.0
  %1100 = vmatprep.subr.mxu0 0.0
  %1101 = vmatpush1.msra.mxu0 0.0
  %1102 = vmatprep.subr.mxu0 0.0
  %1103 = vmatpush1.msra.mxu0 0.0
  %1104 = vmatprep.subr.mxu0 0.0
  %1105 = vmatpush1.msra.mxu0 0.0
  %1106 = vmatprep.subr.mxu0 0.0
  %1107 = vmatpush1.msra.mxu0 0.0
  %1108 = vmatprep.subr.mxu0 0.0
  %1109 = vmatpush1.msra.mxu0 0.0
  %1110 = vmatprep.subr.mxu0 0.0
  %1111 = vmatpush1.msra.mxu0 0.0
  %1112 = vmatprep.subr.mxu0 0.0
  %1113 = vmatpush1.msra.mxu0 0.0
  %1114 = vmatprep.subr.mxu0 0.0
  %1115 = vmatpush1.msra.mxu0 0.0
  %1116 = vmatprep.subr.mxu0 0.0
  %1117 = vmatpush1.msra.mxu0 %v1083
  %1118 = vmatprep.subr.mxu0 0.0
  %1119 = vmatpush1.msra.mxu0 %v1082
  %1120 = vmatprep.subr.mxu0 0.0
  %1121 = vmatpush2.msra.mxu0 0.0
  %1122 = vmatprep.subr.mxu0 0.0
  %1123 = vmatpush2.msra.mxu0 0.0
  %1124 = vmatprep.subr.mxu0 0.0
  %1125 = vmatpush2.msra.mxu0 0.0
  %1126 = vmatprep.subr.mxu0 0.0
  %1127 = vmatpush2.msra.mxu0 0.0
  %1128 = vmatprep.subr.mxu0 0.0
  %1129 = vmatpush2.msra.mxu0 0.0
  %1130 = vmatprep.subr.mxu0 0.0
  %1131 = vmatpush2.msra.mxu0 0.0
  %1132 = vmatprep.subr.mxu0 0.0
  %1133 = vmatpush2.msra.mxu0 0.0
  %1134 = vmatprep.subr.mxu0 0.0
  %1135 = vmatpush2.msra.mxu0 0.0
  %1136 = vmatprep.subr.mxu0 0.0
  %1137 = vmatpush2.msra.mxu0 0.0
  %1138 = vmatprep.subr.mxu0 0.0
  %1139 = vmatpush2.msra.mxu0 0.0
  %1140 = vmatprep.subr.mxu0 0.0
  %1141 = vmatpush2.msra.mxu0 0.0
  %1142 = vmatprep.subr.mxu0 0.0
  %1143 = vmatpush2.msra.mxu0 0.0
  %1144 = vmatprep.subr.mxu0 0.0
  %1145 = vmatpush2.msra.mxu0 0.0
  %1146 = vmatprep.subr.mxu0 0.0
  %1147 = vmatpush2.msra.mxu0 0.0
  %1148 = vmatprep.subr.mxu0 0.0
  %1149 = vmatpush2.msra.mxu0 0.0
  %1150 = vmatprep.subr.mxu0 0.0
  %1151 = vmatpush2.msra.mxu0 0.0
  %1152 = vmatprep.mubr.f32.mxu0 0.0
  %1153 = vmatmul.mubr.f32.gmra.mxu0 %v1086
  %v1154 = vpop.f32.mrf.mxu0
  %v1155 = vadd.f32 0.0, %v1154
  %v1156 = vpop.f32.mrf.mxu0
  %1157 = vdwg.mxu0
  %v1158 = vld [vmem:[%s3] sm:$0x3]
  %1160 = vrot.lane.b32.xlu0 %v1155, 49
  %v1161 = vpop.permute.xlu0 %1160
  %1163 = vrot.lane.b32.xlu0 %v1155, 18
  %v1164 = vpop.permute.xlu0 %1163
  %vm1166 = vcmask 138240
  %v1167 = vsel %vm1166, %v1158, %v1161
  %vm1168 = vcmask 146432
  %v1169 = vsel %vm1168, %v1167, %v1164
  %v1170 = vld [vmem:[%s19] sm:$0xff]
  %v1171 = vld [vmem:[%s19 + $0x8] sm:$0xff]
  %v1172 = vld [vmem:[%s19 + $0x10] sm:$0xff]
  %v1173 = vld [vmem:[%s19 + $0x18] sm:$0xff]
  %v1174 = vld [vmem:[%s19 + $0x20] sm:$0xff]
  %v1175 = vld [vmem:[%s19 + $0x28] sm:$0xff]
  %v1176 = vld [vmem:[%s19 + $0x30] sm:$0xff]
  %v1177 = vld [vmem:[%s19 + $0x38] sm:$0xff]
  %v1178 = vld [vmem:[%s19 + $0x40] sm:$0xff]
  %v1179 = vld [vmem:[%s19 + $0x48] sm:$0xff]
  %v1180 = vld [vmem:[%s19 + $0x50] sm:$0xff]
  %v1181 = vld [vmem:[%s19 + $0x58] sm:$0xff]
  %v1182 = vld [vmem:[%s19 + $0x60] sm:$0xff]
  %v1183 = vld [vmem:[%s19 + $0x68] sm:$0xff]
  %v1184 = vld [vmem:[%s19 + $0x70] sm:$0x3]
  %v1185 = vld [vmem:[%s20] sm:$0x1]
  %v1187 = vlaneseq
  %v1188 = vshrl.u32 %v1187, 7
  %v1189 = vsub.s32 0, %v1188
  %v1190 = vrot.slane %v1185, %v1189
  %vm1192 = vcmask 932864
  %v1194 = vsel %vm1192, %v1169, 0
  %vm1196 = vcmask 1041408
  %v1198 = vsel %vm1196, %v1184, 0
  %1200 = vmatprep.subr.mxu0 0.0
  %1201 = vmatpush1.msra.mxu0 0.0
  %1202 = vmatprep.subr.mxu0 0.0
  %1203 = vmatpush1.msra.mxu0 %v1198
  %1204 = vmatprep.subr.mxu0 0.0
  %1205 = vmatpush1.msra.mxu0 %v1183
  %1206 = vmatprep.subr.mxu0 0.0
  %1207 = vmatpush1.msra.mxu0 %v1182
  %1208 = vmatprep.subr.mxu0 0.0
  %1209 = vmatpush1.msra.mxu0 %v1181
  %1210 = vmatprep.subr.mxu0 0.0
  %1211 = vmatpush1.msra.mxu0 %v1180
  %1212 = vmatprep.subr.mxu0 0.0
  %1213 = vmatpush1.msra.mxu0 %v1179
  %1214 = vmatprep.subr.mxu0 0.0
  %1215 = vmatpush1.msra.mxu0 %v1178
  %1216 = vmatprep.subr.mxu0 0.0
  %1217 = vmatpush1.msra.mxu0 %v1177
  %1218 = vmatprep.subr.mxu0 0.0
  %1219 = vmatpush1.msra.mxu0 %v1176
  %1220 = vmatprep.subr.mxu0 0.0
  %1221 = vmatpush1.msra.mxu0 %v1175
  %1222 = vmatprep.subr.mxu0 0.0
  %1223 = vmatpush1.msra.mxu0 %v1174
  %1224 = vmatprep.subr.mxu0 0.0
  %1225 = vmatpush1.msra.mxu0 %v1173
  %1226 = vmatprep.subr.mxu0 0.0
  %1227 = vmatpush1.msra.mxu0 %v1172
  %1228 = vmatprep.subr.mxu0 0.0
  %1229 = vmatpush1.msra.mxu0 %v1171
  %1230 = vmatprep.subr.mxu0 0.0
  %1231 = vmatpush1.msra.mxu0 %v1170
  %1232 = vmatprep.subr.mxu0 0.0
  %1233 = vmatpush2.msra.mxu0 0.0
  %1234 = vmatprep.subr.mxu0 0.0
  %1235 = vmatpush2.msra.mxu0 0.0
  %1236 = vmatprep.subr.mxu0 0.0
  %1237 = vmatpush2.msra.mxu0 0.0
  %1238 = vmatprep.subr.mxu0 0.0
  %1239 = vmatpush2.msra.mxu0 0.0
  %1240 = vmatprep.subr.mxu0 0.0
  %1241 = vmatpush2.msra.mxu0 0.0
  %1242 = vmatprep.subr.mxu0 0.0
  %1243 = vmatpush2.msra.mxu0 0.0
  %1244 = vmatprep.subr.mxu0 0.0
  %1245 = vmatpush2.msra.mxu0 0.0
  %1246 = vmatprep.subr.mxu0 0.0
  %1247 = vmatpush2.msra.mxu0 0.0
  %1248 = vmatprep.subr.mxu0 0.0
  %1249 = vmatpush2.msra.mxu0 0.0
  %1250 = vmatprep.subr.mxu0 0.0
  %1251 = vmatpush2.msra.mxu0 0.0
  %1252 = vmatprep.subr.mxu0 0.0
  %1253 = vmatpush2.msra.mxu0 0.0
  %1254 = vmatprep.subr.mxu0 0.0
  %1255 = vmatpush2.msra.mxu0 0.0
  %1256 = vmatprep.subr.mxu0 0.0
  %1257 = vmatpush2.msra.mxu0 0.0
  %1258 = vmatprep.subr.mxu0 0.0
  %1259 = vmatpush2.msra.mxu0 0.0
  %1260 = vmatprep.subr.mxu0 0.0
  %1261 = vmatpush2.msra.mxu0 0.0
  %1262 = vmatprep.subr.mxu0 0.0
  %1263 = vmatpush2.msra.mxu0 0.0
  %1264 = vmatprep.mubr.f32.mxu0 0.0
  %1265 = vmatmul.mubr.f32.gmra.mxu0 %v1194
  %v1266 = vpop.f32.mrf.mxu0
  %v1267 = vadd.f32 %v1190, %v1266
  %v1268 = vpop.f32.mrf.mxu0
  %1269 = vdwg.mxu0
  %v1270 = vmax.f32 %v1267, 0.0
  %v1271 = vld [vmem:[%s21] sm:$0xff]
  %v1272 = vld [vmem:[%s21 + $0x8] sm:$0xff]
  %v1273 = vld [vmem:[%s21 + $0x10] sm:$0xff]
  %v1274 = vld [vmem:[%s21 + $0x18] sm:$0xff]
  %v1275 = vld [vmem:[#allocation3] sm:$0x1]
  %v1277 = vlaneseq
  %v1278 = vshrl.u32 %v1277, 7
  %v1279 = vsub.s32 0, %v1278
  %v1280 = vrot.slane %v1275, %v1279
  %v1283 = vsel %vm363, %v1270, 0
  %1285 = vmatprep.subr.mxu0 0.0
  %1286 = vmatpush1.msra.mxu0 0.0
  %1287 = vmatprep.subr.mxu0 0.0
  %1288 = vmatpush1.msra.mxu0 0.0
  %1289 = vmatprep.subr.mxu0 0.0
  %1290 = vmatpush1.msra.mxu0 0.0
  %1291 = vmatprep.subr.mxu0 0.0
  %1292 = vmatpush1.msra.mxu0 0.0
  %1293 = vmatprep.subr.mxu0 0.0
  %1294 = vmatpush1.msra.mxu0 0.0
  %1295 = vmatprep.subr.mxu0 0.0
  %1296 = vmatpush1.msra.mxu0 0.0
  %1297 = vmatprep.subr.mxu0 0.0
  %1298 = vmatpush1.msra.mxu0 0.0
  %1299 = vmatprep.subr.mxu0 0.0
  %1300 = vmatpush1.msra.mxu0 0.0
  %1301 = vmatprep.subr.mxu0 0.0
  %1302 = vmatpush1.msra.mxu0 0.0
  %1303 = vmatprep.subr.mxu0 0.0
  %1304 = vmatpush1.msra.mxu0 0.0
  %1305 = vmatprep.subr.mxu0 0.0
  %1306 = vmatpush1.msra.mxu0 0.0
  %1307 = vmatprep.subr.mxu0 0.0
  %1308 = vmatpush1.msra.mxu0 0.0
  %1309 = vmatprep.subr.mxu0 0.0
  %1310 = vmatpush1.msra.mxu0 %v1274
  %1311 = vmatprep.subr.mxu0 0.0
  %1312 = vmatpush1.msra.mxu0 %v1273
  %1313 = vmatprep.subr.mxu0 0.0
  %1314 = vmatpush1.msra.mxu0 %v1272
  %1315 = vmatprep.subr.mxu0 0.0
  %1316 = vmatpush1.msra.mxu0 %v1271
  %1317 = vmatprep.subr.mxu0 0.0
  %1318 = vmatpush2.msra.mxu0 0.0
  %1319 = vmatprep.subr.mxu0 0.0
  %1320 = vmatpush2.msra.mxu0 0.0
  %1321 = vmatprep.subr.mxu0 0.0
  %1322 = vmatpush2.msra.mxu0 0.0
  %1323 = vmatprep.subr.mxu0 0.0
  %1324 = vmatpush2.msra.mxu0 0.0
  %1325 = vmatprep.subr.mxu0 0.0
  %1326 = vmatpush2.msra.mxu0 0.0
  %1327 = vmatprep.subr.mxu0 0.0
  %1328 = vmatpush2.msra.mxu0 0.0
  %1329 = vmatprep.subr.mxu0 0.0
  %1330 = vmatpush2.msra.mxu0 0.0
  %1331 = vmatprep.subr.mxu0 0.0
  %1332 = vmatpush2.msra.mxu0 0.0
  %1333 = vmatprep.subr.mxu0 0.0
  %1334 = vmatpush2.msra.mxu0 0.0
  %1335 = vmatprep.subr.mxu0 0.0
  %1336 = vmatpush2.msra.mxu0 0.0
  %1337 = vmatprep.subr.mxu0 0.0
  %1338 = vmatpush2.msra.mxu0 0.0
  %1339 = vmatprep.subr.mxu0 0.0
  %1340 = vmatpush2.msra.mxu0 0.0
  %1341 = vmatprep.subr.mxu0 0.0
  %1342 = vmatpush2.msra.mxu0 0.0
  %1343 = vmatprep.subr.mxu0 0.0
  %1344 = vmatpush2.msra.mxu0 0.0
  %1345 = vmatprep.subr.mxu0 0.0
  %1346 = vmatpush2.msra.mxu0 0.0
  %1347 = vmatprep.subr.mxu0 0.0
  %1348 = vmatpush2.msra.mxu0 0.0
  %1349 = vmatprep.mubr.f32.mxu0 0.0
  %1350 = vmatmul.mubr.f32.gmra.mxu0 %v1283
  %v1351 = vpop.f32.mrf.mxu0
  %v1352 = vadd.f32 %v1280, %v1351
  %v1353 = vpop.f32.mrf.mxu0
  %1354 = vdwg.mxu0
  %vm1355 = vcmask 1024
  %1356 = vst.msk [vmem:[%s24] sm:$0x3] %vm1355, %v1352
  // Predicated region
  $region94: #{tpu_custom_call.1} parent=0 // pred_check
    _
  $region95: #{tpu_custom_call.1} parent=0 // pred_check_branch
    %1358 = sbr.rel (0) target = $region97
  $region96: #{tpu_custom_call.1} parent=0 // pred_region
    _
  $region97: #{tpu_custom_call.1} parent=0 // pred_fallthru
    _
  // Predicated region
  $region98: #{tpu_custom_call.1} parent=0 // pred_check
    _
  $region99: #{tpu_custom_call.1} parent=0 // pred_check_branch
    %1360 = sbr.rel (0) target = $region101
  $region100: #{tpu_custom_call.1} parent=0 // pred_region
    _
  $region101: #{tpu_custom_call.1} parent=0 // pred_fallthru
    _
  // Predicated region
  $region102: #{tpu_custom_call.1} parent=0 // pred_check
    _
  $region103: #{tpu_custom_call.1} parent=0 // pred_check_branch
    %1362 = sbr.rel (0) target = $region105
  $region104: #{tpu_custom_call.1} parent=0 // pred_region
    _
  $region105: #{tpu_custom_call.1} parent=0 // pred_fallthru
    _
  // Predicated region
  $region106: #{tpu_custom_call.1} parent=0 // pred_check
    _
  $region107: #{tpu_custom_call.1} parent=0 // pred_check_branch
    %1364 = sbr.rel (0) target = $region109
  $region108: #{tpu_custom_call.1} parent=0 // pred_region
    _
  $region109: #{tpu_custom_call.1} parent=0 // pred_fallthru
    _

</llo_original>
